<compile_context>
chip_gen: v7x
topology: tpu7x:2x2x1
jax: 0.10.0
libtpu: 0.0.40
codegen_flags: <defaults>
</compile_context>

<pallas_src>
import functools

import jax
import jax.numpy as jnp
from jax import lax
from jax.experimental import pallas as pl
from jax.experimental.pallas import tpu as pltpu


def _context_extraction_kernel(x_ref, col_ref, dw_ref, s1_ref, b1_ref,
                               w2t_ref, s2_ref, b2_ref, wpt_ref, sp_ref, bp_ref,
                               o_ref, *, W):
    """One grid step = one image, everything channel-major (channels on sublanes, H*W on lanes).

    x_ref : (1, C, HW)   col_ref : (1, HW) int32 (w-coordinate of each flattened pixel)
    o_ref : (1, Co, HW)
    """
    C, HW = x_ref.shape[1], x_ref.shape[2]

    x = x_ref[0].astype(jnp.float32)              # (C, HW)
    col = col_ref[...]                            # (1, HW)

    # ---------------- Stage 1: depthwise 3x3, padding=1, groups=C  + BN + ReLU (VPU) ----------
    # Spatial neighbours are flat lane shifts of +-(ky-1)*W +-(kx-1); zero padding of the flat
    # axis handles row-out-of-range reads, a per-column mask handles column-out-of-range reads
    # (the two corner wrap cases are always column-invalid, so the mask covers them too).
    P1 = W + 1
    zpad1 = jnp.zeros((C, P1), jnp.float32)
    xpad = jnp.concatenate([zpad1, x, zpad1], axis=-1)        # (C, HW + 2*(W+1))
    dw = dw_ref[...]                                          # (C, 9), k = ky*3 + kx

    acc1 = jnp.zeros((C, HW), jnp.float32)
    for kx in range(3):
        part = jnp.zeros((C, HW), jnp.float32)
        for ky in range(3):
            k = ky * 3 + kx
            s = (ky - 1) * W + (kx - 1)
            part = part + xpad[:, P1 + s:P1 + s + HW] * dw[:, k:k + 1]
        if kx == 0:                                   # left neighbour invalid at w == 0
            part = jnp.where(col >= 1, part, 0.0)
        elif kx == 2:                                 # right neighbour invalid at w == W-1
            part = jnp.where(col <= W - 2, part, 0.0)
        acc1 = acc1 + part
    y1 = jnp.maximum(acc1 * s1_ref[...] + b1_ref[...], 0.0)   # (C, HW)

    # ------------- Stage 2: dense 3x3, dilation=2, padding=2  ->  ONE K=9C im2col matmul ------
    # slab_t[k*C + cin, p] = y1[cin, neighbour(p, tap k)]; built from 9 lane-shifted views and
    # concatenated along sublanes (each piece is C=32 rows -> 8-aligned, no masked stores).
    P2 = 2 * W + 2
    zpad2 = jnp.zeros((C, P2), jnp.float32)
    ypad = jnp.concatenate([zpad2, y1, zpad2], axis=-1)       # (C, HW + 2*(2W+2))
    pieces = []
    for ky in range(3):
        for kx in range(3):
            s = 2 * (ky - 1) * W + 2 * (kx - 1)
            piece = ypad[:, P2 + s:P2 + s + HW]
            if kx == 0:                               # needs w-2 >= 0
                piece = jnp.where(col >= 2, piece, 0.0)
            elif kx == 2:                             # needs w+2 <= W-1
                piece = jnp.where(col <= W - 3, piece, 0.0)
            pieces.append(piece)
    slab_t = jnp.concatenate(pieces, axis=0)                  # (9C, HW)

    # (Cout, 9C) x (9C, HW): single MXU matmul, K=288, N=HW=256 lane-dense.
    out2 = jnp.dot(w2t_ref[...], slab_t, preferred_element_type=jnp.float32)   # (C, HW)
    y2 = jnp.maximum(out2 * s2_ref[...] + b2_ref[...], 0.0)

    # ---------------- Stage 3: 1x1 projection conv + BN (MXU), lane-dense output --------------
    out3 = jnp.dot(wpt_ref[...], y2, preferred_element_type=jnp.float32)       # (Co, HW)
    o_ref[0] = (out3 * sp_ref[...] + bp_ref[...]).astype(o_ref.dtype)


def context_extraction_forward(x_nchw, p):
    B, C, H, W = x_nchw.shape
    Co = p["proj_w"].shape[0]
    HW = H * W
    eps = 1e-5

    # Fold BatchNorm (eval mode) + conv bias into per-channel scale / bias.
    s1 = p["bn1_g"] / jnp.sqrt(p["bn1_v"] + eps)
    b1 = (p["dconv1_b"] - p["bn1_m"]) * s1 + p["bn1_b"]
    s2 = p["bn2_g"] / jnp.sqrt(p["bn2_v"] + eps)
    b2 = (p["dconv2_b"] - p["bn2_m"]) * s2 + p["bn2_b"]
    sp = p["bn3_g"] / jnp.sqrt(p["bn3_v"] + eps)
    bp = (p["proj_b"] - p["bn3_m"]) * sp + p["bn3_b"]

    # Weight re-layout (glue).
    dw = p["dconv1_w"][:, 0].reshape(C, 9)                              # (C, 9), k = ky*3+kx
    w2t = jnp.transpose(p["dconv2_w"], (0, 2, 3, 1)).reshape(C, 9 * C)  # (Cout, 9*Cin)
    wpt = p["proj_w"][:, :, 0, 0]                                       # (Co, Cin)

    # Channel-major input / output: only free reshapes, no transposes, no host-side padding.
    x_cm = x_nchw.reshape(B, C, HW)
    col = jnp.tile(jnp.arange(W, dtype=jnp.int32)[None, :], (H, 1)).reshape(1, HW)

    flops = 2 * B * HW * (9 * C + 9 * C * C + C * Co)
    bytes_accessed = 4 * (B * C * HW + B * Co * HW
                          + 9 * C + 9 * C * C + C * Co + 4 * C + 2 * Co + HW)

    kernel = functools.partial(_context_extraction_kernel, W=W)

    # NOTE: grid=(B,) "parallel" keeps both v7x TensorCores busy (one image each); each step is
    # a single K=288 matmul with M=H*W=256.  For larger H*W, add row-block tiling with a halo
    # and an explicit vmem_limit_bytes (VMEM use here is < 1 MiB per step).
    out_cm = pl.pallas_call(
        kernel,
        out_shape=jax.ShapeDtypeStruct((B, Co, HW), jnp.float32),
        grid_spec=pltpu.PrefetchScalarGridSpec(
            num_scalar_prefetch=0,
            grid=(B,),
            in_specs=[
                pl.BlockSpec((1, C, HW), lambda b: (b, 0, 0)),
                pl.BlockSpec((1, HW), lambda b: (0, 0)),
                pl.BlockSpec((C, 9), lambda b: (0, 0)),
                pl.BlockSpec((C, 1), lambda b: (0, 0)),
                pl.BlockSpec((C, 1), lambda b: (0, 0)),
                pl.BlockSpec((C, 9 * C), lambda b: (0, 0)),
                pl.BlockSpec((C, 1), lambda b: (0, 0)),
                pl.BlockSpec((C, 1), lambda b: (0, 0)),
                pl.BlockSpec((Co, C), lambda b: (0, 0)),
                pl.BlockSpec((Co, 1), lambda b: (0, 0)),
                pl.BlockSpec((Co, 1), lambda b: (0, 0)),
            ],
            out_specs=pl.BlockSpec((1, Co, HW), lambda b: (b, 0, 0)),
        ),
        compiler_params=pltpu.CompilerParams(dimension_semantics=("parallel",)),
        cost_estimate=pl.CostEstimate(flops=flops, transcendentals=0,
                                      bytes_accessed=bytes_accessed),
    )(x_cm, col, dw, s1.reshape(C, 1), b1.reshape(C, 1), w2t,
      s2.reshape(C, 1), b2.reshape(C, 1), wpt, sp.reshape(Co, 1), bp.reshape(Co, 1))

    return out_cm.reshape(B, Co, H, W)                      # metadata-only reshape (NCHW)


def reference_forward(x, p):
    """Pure-JAX reference matching PyTorch (eval-mode BN) semantics, NCHW."""
    eps = 1e-5
    dn = ("NCHW", "OIHW", "NCHW")
    C = x.shape[1]

    def bn(y, g, b, m, v):
        return ((y - m[None, :, None, None]) / jnp.sqrt(v + eps)[None, :, None, None]
                * g[None, :, None, None] + b[None, :, None, None])

    y = lax.conv_general_dilated(x, p["dconv1_w"], (1, 1), ((1, 1), (1, 1)),
                                 feature_group_count=C, dimension_numbers=dn)
    y = y + p["dconv1_b"][None, :, None, None]
    y = jnp.maximum(bn(y, p["bn1_g"], p["bn1_b"], p["bn1_m"], p["bn1_v"]), 0.0)

    y = lax.conv_general_dilated(y, p["dconv2_w"], (1, 1), ((2, 2), (2, 2)),
                                 rhs_dilation=(2, 2), dimension_numbers=dn)
    y = y + p["dconv2_b"][None, :, None, None]
    y = jnp.maximum(bn(y, p["bn2_g"], p["bn2_b"], p["bn2_m"], p["bn2_v"]), 0.0)

    y = lax.conv_general_dilated(y, p["proj_w"], (1, 1), ((0, 0), (0, 0)),
                                 dimension_numbers=dn)
    y = y + p["proj_b"][None, :, None, None]
    y = bn(y, p["bn3_g"], p["bn3_b"], p["bn3_m"], p["bn3_v"])
    return y


def init_params(key, dim, reduction=None):
    red = 1 if reduction is None else 2
    co = dim // red
    ks = jax.random.split(key, 16)
    u = lambda k, shape, lo, hi: jax.random.uniform(k, shape, jnp.float32, lo, hi)
    n = lambda k, shape, s: s * jax.random.normal(k, shape, jnp.float32)
    return {
        "dconv1_w": n(ks[0], (dim, 1, 3, 3), 0.2),
        "dconv1_b": n(ks[1], (dim,), 0.1),
        "bn1_g": u(ks[2], (dim,), 0.5, 1.5),
        "bn1_b": n(ks[3], (dim,), 0.1),
        "bn1_m": n(ks[4], (dim,), 0.1),
        "bn1_v": u(ks[5], (dim,), 0.5, 1.5),
        "dconv2_w": n(ks[6], (dim, dim, 3, 3), 0.05),
        "dconv2_b": n(ks[7], (dim,), 0.1),
        "bn2_g": u(ks[8], (dim,), 0.5, 1.5),
        "bn2_b": n(ks[9], (dim,), 0.1),
        "bn2_m": n(ks[10], (dim,), 0.1),
        "bn2_v": u(ks[11], (dim,), 0.5, 1.5),
        "proj_w": n(ks[12], (co, dim, 1, 1), 0.1),
        "proj_b": n(ks[13], (co,), 0.1),
        "bn3_g": u(ks[14], (co,), 0.5, 1.5),
        "bn3_b": n(ks[15], (co,), 0.1),
        "bn3_m": jnp.zeros((co,), jnp.float32),
        "bn3_v": jnp.ones((co,), jnp.float32),
    }


if __name__ == "__main__":
    key = jax.random.PRNGKey(0)
    kx, kp = jax.random.split(key)
    B, dim, H, W = 2, 32, 16, 16          # reduction=None -> output channels == dim
    x = jax.random.normal(kx, (B, dim, H, W), jnp.float32)
    params = init_params(kp, dim, reduction=None)

    out = context_extraction_forward(x, params)
    out = jax.block_until_ready(out)

    ref = reference_forward(x, params)
    assert out.shape == ref.shape, (out.shape, ref.shape)
    err = float(jnp.max(jnp.abs(out - ref)))
    assert err < 1e-3, f"max abs err {err}"
    print("KERNEL_OK")
</pallas_src>

<mosaic_0001>
module attributes {stable_mosaic.version = 11 : i64} {
  func.func @_context_extraction_kernel(%arg0: i32, %arg1: memref<1x32x256xf32, #tpu.memory_space<vmem>>, %arg2: memref<1x256xi32, #tpu.memory_space<vmem>>, %arg3: memref<32x9xf32, #tpu.memory_space<vmem>>, %arg4: memref<32x1xf32, #tpu.memory_space<vmem>>, %arg5: memref<32x1xf32, #tpu.memory_space<vmem>>, %arg6: memref<32x288xf32, #tpu.memory_space<vmem>>, %arg7: memref<32x1xf32, #tpu.memory_space<vmem>>, %arg8: memref<32x1xf32, #tpu.memory_space<vmem>>, %arg9: memref<32x32xf32, #tpu.memory_space<vmem>>, %arg10: memref<32x1xf32, #tpu.memory_space<vmem>>, %arg11: memref<32x1xf32, #tpu.memory_space<vmem>>, %arg12: memref<1x32x256xf32, #tpu.memory_space<vmem>>) attributes {dimension_semantics = [#tpu.dimension_semantics<parallel>], iteration_bounds = array<i64: 2>, scalar_prefetch = 0 : i64, scratch_operands = 0 : i64, tpu.core_type = #tpu.core_type<tc>, window_params = [{transform_indices = @transform_0, window_bounds = array<i64: 1, 32, 256>}, {pipeline_mode = #tpu.pipeline_mode<synchronous>, transform_indices = @transform_1, window_bounds = array<i64: 1, 256>}, {pipeline_mode = #tpu.pipeline_mode<synchronous>, transform_indices = @transform_2, window_bounds = array<i64: 32, 9>}, {pipeline_mode = #tpu.pipeline_mode<synchronous>, transform_indices = @transform_3, window_bounds = array<i64: 32, 1>}, {pipeline_mode = #tpu.pipeline_mode<synchronous>, transform_indices = @transform_4, window_bounds = array<i64: 32, 1>}, {pipeline_mode = #tpu.pipeline_mode<synchronous>, transform_indices = @transform_5, window_bounds = array<i64: 32, 288>}, {pipeline_mode = #tpu.pipeline_mode<synchronous>, transform_indices = @transform_6, window_bounds = array<i64: 32, 1>}, {pipeline_mode = #tpu.pipeline_mode<synchronous>, transform_indices = @transform_7, window_bounds = array<i64: 32, 1>}, {pipeline_mode = #tpu.pipeline_mode<synchronous>, transform_indices = @transform_8, window_bounds = array<i64: 32, 32>}, {pipeline_mode = #tpu.pipeline_mode<synchronous>, transform_indices = @transform_9, window_bounds = array<i64: 32, 1>}, {pipeline_mode = #tpu.pipeline_mode<synchronous>, transform_indices = @transform_10, window_bounds = array<i64: 32, 1>}, {transform_indices = @transform_11, window_bounds = array<i64: 1, 32, 256>}]} {
    %c0 = arith.constant 0 : index
    %c0_0 = arith.constant 0 : index
    %c0_1 = arith.constant 0 : index
    %0 = vector.load %arg1[%c0, %c0_0, %c0_1] : memref<1x32x256xf32, #tpu.memory_space<vmem>>, vector<1x32x256xf32>
    %1 = vector.shape_cast %0 : vector<1x32x256xf32> to vector<32x256xf32>
    %c0_2 = arith.constant 0 : index
    %c0_3 = arith.constant 0 : index
    %2 = vector.load %arg2[%c0_2, %c0_3] : memref<1x256xi32, #tpu.memory_space<vmem>>, vector<1x256xi32>
    %cst = arith.constant 0.000000e+00 : f32
    %3 = vector.broadcast %cst : f32 to vector<32x17xf32>
    %4 = tpu.concatenate %3, %1, %3 in 1 : vector<32x17xf32>, vector<32x256xf32>, vector<32x17xf32> -> vector<32x290xf32>
    %c0_4 = arith.constant 0 : index
    %c0_5 = arith.constant 0 : index
    %5 = vector.load %arg3[%c0_4, %c0_5] : memref<32x9xf32, #tpu.memory_space<vmem>>, vector<32x9xf32>
    %cst_6 = arith.constant 0.000000e+00 : f32
    %6 = vector.broadcast %cst_6 : f32 to vector<32x256xf32>
    %cst_7 = arith.constant 0.000000e+00 : f32
    %7 = vector.broadcast %cst_7 : f32 to vector<32x256xf32>
    %8 = vector.extract_strided_slice %4 {offsets = [0, 0], sizes = [32, 256], strides = [1, 1]} : vector<32x290xf32> to vector<32x256xf32>
    %9 = vector.extract_strided_slice %5 {offsets = [0, 0], sizes = [32, 1], strides = [1, 1]} : vector<32x9xf32> to vector<32x1xf32>
    %10 = vector.broadcast %9 : vector<32x1xf32> to vector<32x256xf32>
    %11 = arith.mulf %8, %10 : vector<32x256xf32>
    %12 = arith.addf %7, %11 : vector<32x256xf32>
    %13 = vector.extract_strided_slice %4 {offsets = [0, 16], sizes = [32, 256], strides = [1, 1]} : vector<32x290xf32> to vector<32x256xf32>
    %14 = vector.extract_strided_slice %5 {offsets = [0, 3], sizes = [32, 1], strides = [1, 1]} : vector<32x9xf32> to vector<32x1xf32>
    %15 = vector.broadcast %14 : vector<32x1xf32> to vector<32x256xf32>
    %16 = arith.mulf %13, %15 : vector<32x256xf32>
    %17 = arith.addf %12, %16 : vector<32x256xf32>
    %18 = vector.extract_strided_slice %4 {offsets = [0, 32], sizes = [32, 256], strides = [1, 1]} : vector<32x290xf32> to vector<32x256xf32>
    %19 = vector.extract_strided_slice %5 {offsets = [0, 6], sizes = [32, 1], strides = [1, 1]} : vector<32x9xf32> to vector<32x1xf32>
    %20 = vector.broadcast %19 : vector<32x1xf32> to vector<32x256xf32>
    %21 = arith.mulf %18, %20 : vector<32x256xf32>
    %22 = arith.addf %17, %21 : vector<32x256xf32>
    %c1_i32 = arith.constant 1 : i32
    %23 = vector.broadcast %c1_i32 : i32 to vector<1x256xi32>
    %24 = arith.cmpi sge, %2, %23 : vector<1x256xi32>
    %cst_8 = arith.constant 0.000000e+00 : f32
    %25 = vector.shape_cast %24 : vector<1x256xi1> to vector<1x256xi1>
    %26 = vector.broadcast %25 : vector<1x256xi1> to vector<32x256xi1>
    %27 = vector.broadcast %cst_8 : f32 to vector<32x256xf32>
    %28 = arith.select %26, %22, %27 : vector<32x256xi1>, vector<32x256xf32>
    %29 = arith.addf %6, %28 : vector<32x256xf32>
    %cst_9 = arith.constant 0.000000e+00 : f32
    %30 = vector.broadcast %cst_9 : f32 to vector<32x256xf32>
    %31 = vector.extract_strided_slice %4 {offsets = [0, 1], sizes = [32, 256], strides = [1, 1]} : vector<32x290xf32> to vector<32x256xf32>
    %32 = vector.extract_strided_slice %5 {offsets = [0, 1], sizes = [32, 1], strides = [1, 1]} : vector<32x9xf32> to vector<32x1xf32>
    %33 = vector.broadcast %32 : vector<32x1xf32> to vector<32x256xf32>
    %34 = arith.mulf %31, %33 : vector<32x256xf32>
    %35 = arith.addf %30, %34 : vector<32x256xf32>
    %36 = vector.extract_strided_slice %4 {offsets = [0, 17], sizes = [32, 256], strides = [1, 1]} : vector<32x290xf32> to vector<32x256xf32>
    %37 = vector.extract_strided_slice %5 {offsets = [0, 4], sizes = [32, 1], strides = [1, 1]} : vector<32x9xf32> to vector<32x1xf32>
    %38 = vector.broadcast %37 : vector<32x1xf32> to vector<32x256xf32>
    %39 = arith.mulf %36, %38 : vector<32x256xf32>
    %40 = arith.addf %35, %39 : vector<32x256xf32>
    %41 = vector.extract_strided_slice %4 {offsets = [0, 33], sizes = [32, 256], strides = [1, 1]} : vector<32x290xf32> to vector<32x256xf32>
    %42 = vector.extract_strided_slice %5 {offsets = [0, 7], sizes = [32, 1], strides = [1, 1]} : vector<32x9xf32> to vector<32x1xf32>
    %43 = vector.broadcast %42 : vector<32x1xf32> to vector<32x256xf32>
    %44 = arith.mulf %41, %43 : vector<32x256xf32>
    %45 = arith.addf %40, %44 : vector<32x256xf32>
    %46 = arith.addf %29, %45 : vector<32x256xf32>
    %cst_10 = arith.constant 0.000000e+00 : f32
    %47 = vector.broadcast %cst_10 : f32 to vector<32x256xf32>
    %48 = vector.extract_strided_slice %4 {offsets = [0, 2], sizes = [32, 256], strides = [1, 1]} : vector<32x290xf32> to vector<32x256xf32>
    %49 = vector.extract_strided_slice %5 {offsets = [0, 2], sizes = [32, 1], strides = [1, 1]} : vector<32x9xf32> to vector<32x1xf32>
    %50 = vector.broadcast %49 : vector<32x1xf32> to vector<32x256xf32>
    %51 = arith.mulf %48, %50 : vector<32x256xf32>
    %52 = arith.addf %47, %51 : vector<32x256xf32>
    %53 = vector.extract_strided_slice %4 {offsets = [0, 18], sizes = [32, 256], strides = [1, 1]} : vector<32x290xf32> to vector<32x256xf32>
    %54 = vector.extract_strided_slice %5 {offsets = [0, 5], sizes = [32, 1], strides = [1, 1]} : vector<32x9xf32> to vector<32x1xf32>
    %55 = vector.broadcast %54 : vector<32x1xf32> to vector<32x256xf32>
    %56 = arith.mulf %53, %55 : vector<32x256xf32>
    %57 = arith.addf %52, %56 : vector<32x256xf32>
    %58 = vector.extract_strided_slice %4 {offsets = [0, 34], sizes = [32, 256], strides = [1, 1]} : vector<32x290xf32> to vector<32x256xf32>
    %59 = vector.extract_strided_slice %5 {offsets = [0, 8], sizes = [32, 1], strides = [1, 1]} : vector<32x9xf32> to vector<32x1xf32>
    %60 = vector.broadcast %59 : vector<32x1xf32> to vector<32x256xf32>
    %61 = arith.mulf %58, %60 : vector<32x256xf32>
    %62 = arith.addf %57, %61 : vector<32x256xf32>
    %c14_i32 = arith.constant 14 : i32
    %63 = vector.broadcast %c14_i32 : i32 to vector<1x256xi32>
    %64 = arith.cmpi sle, %2, %63 : vector<1x256xi32>
    %cst_11 = arith.constant 0.000000e+00 : f32
    %65 = vector.shape_cast %64 : vector<1x256xi1> to vector<1x256xi1>
    %66 = vector.broadcast %65 : vector<1x256xi1> to vector<32x256xi1>
    %67 = vector.broadcast %cst_11 : f32 to vector<32x256xf32>
    %68 = arith.select %66, %62, %67 : vector<32x256xi1>, vector<32x256xf32>
    %69 = arith.addf %46, %68 : vector<32x256xf32>
    %c0_12 = arith.constant 0 : index
    %c0_13 = arith.constant 0 : index
    %70 = vector.load %arg4[%c0_12, %c0_13] : memref<32x1xf32, #tpu.memory_space<vmem>>, vector<32x1xf32>
    %71 = vector.broadcast %70 : vector<32x1xf32> to vector<32x256xf32>
    %72 = arith.mulf %69, %71 : vector<32x256xf32>
    %c0_14 = arith.constant 0 : index
    %c0_15 = arith.constant 0 : index
    %73 = vector.load %arg5[%c0_14, %c0_15] : memref<32x1xf32, #tpu.memory_space<vmem>>, vector<32x1xf32>
    %74 = vector.broadcast %73 : vector<32x1xf32> to vector<32x256xf32>
    %75 = arith.addf %72, %74 : vector<32x256xf32>
    %cst_16 = arith.constant 0.000000e+00 : f32
    %76 = vector.broadcast %cst_16 : f32 to vector<32x256xf32>
    %77 = arith.maximumf %75, %76 : vector<32x256xf32>
    %cst_17 = arith.constant 0.000000e+00 : f32
    %78 = vector.broadcast %cst_17 : f32 to vector<32x34xf32>
    %79 = tpu.concatenate %78, %77, %78 in 1 : vector<32x34xf32>, vector<32x256xf32>, vector<32x34xf32> -> vector<32x324xf32>
    %80 = vector.extract_strided_slice %79 {offsets = [0, 0], sizes = [32, 256], strides = [1, 1]} : vector<32x324xf32> to vector<32x256xf32>
    %c2_i32 = arith.constant 2 : i32
    %81 = vector.broadcast %c2_i32 : i32 to vector<1x256xi32>
    %82 = arith.cmpi sge, %2, %81 : vector<1x256xi32>
    %cst_18 = arith.constant 0.000000e+00 : f32
    %83 = vector.shape_cast %82 : vector<1x256xi1> to vector<1x256xi1>
    %84 = vector.broadcast %83 : vector<1x256xi1> to vector<32x256xi1>
    %85 = vector.broadcast %cst_18 : f32 to vector<32x256xf32>
    %86 = arith.select %84, %80, %85 : vector<32x256xi1>, vector<32x256xf32>
    %87 = vector.extract_strided_slice %79 {offsets = [0, 2], sizes = [32, 256], strides = [1, 1]} : vector<32x324xf32> to vector<32x256xf32>
    %88 = vector.extract_strided_slice %79 {offsets = [0, 4], sizes = [32, 256], strides = [1, 1]} : vector<32x324xf32> to vector<32x256xf32>
    %c13_i32 = arith.constant 13 : i32
    %89 = vector.broadcast %c13_i32 : i32 to vector<1x256xi32>
    %90 = arith.cmpi sle, %2, %89 : vector<1x256xi32>
    %cst_19 = arith.constant 0.000000e+00 : f32
    %91 = vector.shape_cast %90 : vector<1x256xi1> to vector<1x256xi1>
    %92 = vector.broadcast %91 : vector<1x256xi1> to vector<32x256xi1>
    %93 = vector.broadcast %cst_19 : f32 to vector<32x256xf32>
    %94 = arith.select %92, %88, %93 : vector<32x256xi1>, vector<32x256xf32>
    %95 = vector.extract_strided_slice %79 {offsets = [0, 32], sizes = [32, 256], strides = [1, 1]} : vector<32x324xf32> to vector<32x256xf32>
    %c2_i32_20 = arith.constant 2 : i32
    %96 = vector.broadcast %c2_i32_20 : i32 to vector<1x256xi32>
    %97 = arith.cmpi sge, %2, %96 : vector<1x256xi32>
    %cst_21 = arith.constant 0.000000e+00 : f32
    %98 = vector.shape_cast %97 : vector<1x256xi1> to vector<1x256xi1>
    %99 = vector.broadcast %98 : vector<1x256xi1> to vector<32x256xi1>
    %100 = vector.broadcast %cst_21 : f32 to vector<32x256xf32>
    %101 = arith.select %99, %95, %100 : vector<32x256xi1>, vector<32x256xf32>
    %102 = vector.extract_strided_slice %79 {offsets = [0, 34], sizes = [32, 256], strides = [1, 1]} : vector<32x324xf32> to vector<32x256xf32>
    %103 = vector.extract_strided_slice %79 {offsets = [0, 36], sizes = [32, 256], strides = [1, 1]} : vector<32x324xf32> to vector<32x256xf32>
    %c13_i32_22 = arith.constant 13 : i32
    %104 = vector.broadcast %c13_i32_22 : i32 to vector<1x256xi32>
    %105 = arith.cmpi sle, %2, %104 : vector<1x256xi32>
    %cst_23 = arith.constant 0.000000e+00 : f32
    %106 = vector.shape_cast %105 : vector<1x256xi1> to vector<1x256xi1>
    %107 = vector.broadcast %106 : vector<1x256xi1> to vector<32x256xi1>
    %108 = vector.broadcast %cst_23 : f32 to vector<32x256xf32>
    %109 = arith.select %107, %103, %108 : vector<32x256xi1>, vector<32x256xf32>
    %110 = vector.extract_strided_slice %79 {offsets = [0, 64], sizes = [32, 256], strides = [1, 1]} : vector<32x324xf32> to vector<32x256xf32>
    %c2_i32_24 = arith.constant 2 : i32
    %111 = vector.broadcast %c2_i32_24 : i32 to vector<1x256xi32>
    %112 = arith.cmpi sge, %2, %111 : vector<1x256xi32>
    %cst_25 = arith.constant 0.000000e+00 : f32
    %113 = vector.shape_cast %112 : vector<1x256xi1> to vector<1x256xi1>
    %114 = vector.broadcast %113 : vector<1x256xi1> to vector<32x256xi1>
    %115 = vector.broadcast %cst_25 : f32 to vector<32x256xf32>
    %116 = arith.select %114, %110, %115 : vector<32x256xi1>, vector<32x256xf32>
    %117 = vector.extract_strided_slice %79 {offsets = [0, 66], sizes = [32, 256], strides = [1, 1]} : vector<32x324xf32> to vector<32x256xf32>
    %118 = vector.extract_strided_slice %79 {offsets = [0, 68], sizes = [32, 256], strides = [1, 1]} : vector<32x324xf32> to vector<32x256xf32>
    %c13_i32_26 = arith.constant 13 : i32
    %119 = vector.broadcast %c13_i32_26 : i32 to vector<1x256xi32>
    %120 = arith.cmpi sle, %2, %119 : vector<1x256xi32>
    %cst_27 = arith.constant 0.000000e+00 : f32
    %121 = vector.shape_cast %120 : vector<1x256xi1> to vector<1x256xi1>
    %122 = vector.broadcast %121 : vector<1x256xi1> to vector<32x256xi1>
    %123 = vector.broadcast %cst_27 : f32 to vector<32x256xf32>
    %124 = arith.select %122, %118, %123 : vector<32x256xi1>, vector<32x256xf32>
    %125 = tpu.concatenate %86, %87, %94, %101, %102, %109, %116, %117, %124 in 0 : vector<32x256xf32>, vector<32x256xf32>, vector<32x256xf32>, vector<32x256xf32>, vector<32x256xf32>, vector<32x256xf32>, vector<32x256xf32>, vector<32x256xf32>, vector<32x256xf32> -> vector<288x256xf32>
    %c0_28 = arith.constant 0 : index
    %c0_29 = arith.constant 0 : index
    %126 = vector.load %arg6[%c0_28, %c0_29] : memref<32x288xf32, #tpu.memory_space<vmem>>, vector<32x288xf32>
    %cst_30 = arith.constant dense<0.000000e+00> : vector<32x256xf32>
    %127 = tpu.matmul %126, %125, %cst_30 {dimension_numbers = #tpu.dot_dimension_numbers<[1], [0], [0], [1], [0, 0, 1, 1], [], []>} : vector<32x288xf32>, vector<288x256xf32>, vector<32x256xf32> -> vector<32x256xf32>
    %c0_31 = arith.constant 0 : index
    %c0_32 = arith.constant 0 : index
    %128 = vector.load %arg7[%c0_31, %c0_32] : memref<32x1xf32, #tpu.memory_space<vmem>>, vector<32x1xf32>
    %129 = vector.broadcast %128 : vector<32x1xf32> to vector<32x256xf32>
    %130 = arith.mulf %127, %129 : vector<32x256xf32>
    %c0_33 = arith.constant 0 : index
    %c0_34 = arith.constant 0 : index
    %131 = vector.load %arg8[%c0_33, %c0_34] : memref<32x1xf32, #tpu.memory_space<vmem>>, vector<32x1xf32>
    %132 = vector.broadcast %131 : vector<32x1xf32> to vector<32x256xf32>
    %133 = arith.addf %130, %132 : vector<32x256xf32>
    %cst_35 = arith.constant 0.000000e+00 : f32
    %134 = vector.broadcast %cst_35 : f32 to vector<32x256xf32>
    %135 = arith.maximumf %133, %134 : vector<32x256xf32>
    %c0_36 = arith.constant 0 : index
    %c0_37 = arith.constant 0 : index
    %136 = vector.load %arg9[%c0_36, %c0_37] : memref<32x32xf32, #tpu.memory_space<vmem>>, vector<32x32xf32>
    %cst_38 = arith.constant dense<0.000000e+00> : vector<32x256xf32>
    %137 = tpu.matmul %136, %135, %cst_38 {dimension_numbers = #tpu.dot_dimension_numbers<[1], [0], [0], [1], [0, 0, 1, 1], [], []>} : vector<32x32xf32>, vector<32x256xf32>, vector<32x256xf32> -> vector<32x256xf32>
    %c0_39 = arith.constant 0 : index
    %c0_40 = arith.constant 0 : index
    %138 = vector.load %arg10[%c0_39, %c0_40] : memref<32x1xf32, #tpu.memory_space<vmem>>, vector<32x1xf32>
    %139 = vector.broadcast %138 : vector<32x1xf32> to vector<32x256xf32>
    %140 = arith.mulf %137, %139 : vector<32x256xf32>
    %c0_41 = arith.constant 0 : index
    %c0_42 = arith.constant 0 : index
    %141 = vector.load %arg11[%c0_41, %c0_42] : memref<32x1xf32, #tpu.memory_space<vmem>>, vector<32x1xf32>
    %142 = vector.broadcast %141 : vector<32x1xf32> to vector<32x256xf32>
    %143 = arith.addf %140, %142 : vector<32x256xf32>
    %c0_43 = arith.constant 0 : index
    %c0_44 = arith.constant 0 : index
    %c0_45 = arith.constant 0 : index
    %144 = vector.load %arg12[%c0_43, %c0_44, %c0_45] : memref<1x32x256xf32, #tpu.memory_space<vmem>>, vector<1x32x256xf32>
    %145 = vector.shape_cast %144 : vector<1x32x256xf32> to vector<32x256xf32>
    %146 = vector.shape_cast %143 : vector<32x256xf32> to vector<1x32x256xf32>
    tpu.vector_store %arg12[%c0_43, %c0_44, %c0_45], %146 {strides = array<i32>} : memref<1x32x256xf32, #tpu.memory_space<vmem>>, vector<1x32x256xf32>,
    return
  }
  func.func @transform_0(%arg0: i32) -> (i32, i32, i32) {
    %c0_i32 = arith.constant 0 : i32
    %c0_i32_0 = arith.constant 0 : i32
    %c0_i32_1 = arith.constant 0 : i32
    return %arg0, %c0_i32, %c0_i32_0 : i32, i32, i32
  }
  func.func @transform_1(%arg0: i32) -> (i32, i32) {
    %c0_i32 = arith.constant 0 : i32
    %c0_i32_0 = arith.constant 0 : i32
    %c0_i32_1 = arith.constant 0 : i32
    return %c0_i32, %c0_i32_0 : i32, i32
  }
  func.func @transform_2(%arg0: i32) -> (i32, i32) {
    %c0_i32 = arith.constant 0 : i32
    %c0_i32_0 = arith.constant 0 : i32
    %c0_i32_1 = arith.constant 0 : i32
    return %c0_i32, %c0_i32_0 : i32, i32
  }
  func.func @transform_3(%arg0: i32) -> (i32, i32) {
    %c0_i32 = arith.constant 0 : i32
    %c0_i32_0 = arith.constant 0 : i32
    %c0_i32_1 = arith.constant 0 : i32
    return %c0_i32, %c0_i32_0 : i32, i32
  }
  func.func @transform_4(%arg0: i32) -> (i32, i32) {
    %c0_i32 = arith.constant 0 : i32
    %c0_i32_0 = arith.constant 0 : i32
    %c0_i32_1 = arith.constant 0 : i32
    return %c0_i32, %c0_i32_0 : i32, i32
  }
  func.func @transform_5(%arg0: i32) -> (i32, i32) {
    %c0_i32 = arith.constant 0 : i32
    %c0_i32_0 = arith.constant 0 : i32
    %c0_i32_1 = arith.constant 0 : i32
    return %c0_i32, %c0_i32_0 : i32, i32
  }
  func.func @transform_6(%arg0: i32) -> (i32, i32) {
    %c0_i32 = arith.constant 0 : i32
    %c0_i32_0 = arith.constant 0 : i32
    %c0_i32_1 = arith.constant 0 : i32
    return %c0_i32, %c0_i32_0 : i32, i32
  }
  func.func @transform_7(%arg0: i32) -> (i32, i32) {
    %c0_i32 = arith.constant 0 : i32
    %c0_i32_0 = arith.constant 0 : i32
    %c0_i32_1 = arith.constant 0 : i32
    return %c0_i32, %c0_i32_0 : i32, i32
  }
  func.func @transform_8(%arg0: i32) -> (i32, i32) {
    %c0_i32 = arith.constant 0 : i32
    %c0_i32_0 = arith.constant 0 : i32
    %c0_i32_1 = arith.constant 0 : i32
    return %c0_i32, %c0_i32_0 : i32, i32
  }
  func.func @transform_9(%arg0: i32) -> (i32, i32) {
    %c0_i32 = arith.constant 0 : i32
    %c0_i32_0 = arith.constant 0 : i32
    %c0_i32_1 = arith.constant 0 : i32
    return %c0_i32, %c0_i32_0 : i32, i32
  }
  func.func @transform_10(%arg0: i32) -> (i32, i32) {
    %c0_i32 = arith.constant 0 : i32
    %c0_i32_0 = arith.constant 0 : i32
    %c0_i32_1 = arith.constant 0 : i32
    return %c0_i32, %c0_i32_0 : i32, i32
  }
  func.func @transform_11(%arg0: i32) -> (i32, i32, i32) {
    %c0_i32 = arith.constant 0 : i32
    %c0_i32_0 = arith.constant 0 : i32
    %c0_i32_1 = arith.constant 0 : i32
    return %arg0, %c0_i32, %c0_i32_0 : i32, i32, i32
  }
}

</mosaic_0001>

<llo_original>
// kernel: tpu_custom_call.1
$region0: #{tpu_custom_call.1}
  #allocation0 [shape = 'u32[]', space=smem, size = 0x4, offset = 0x4, fixed_abs, tag = 'smem constant byte address 0x4 - core index']
  #allocation1 [shape = 'u32[144,128]{1,0:T(1,128)}', space=vmem, size = 0x12000, scoped, tag = 'internal scratch']
  %s0 = inlined_call_operand.vmem [shape: f32[2,32,256], index: 0, kind: input, shape index: {}]
  %s1 = inlined_call_operand.hbm [shape: s32[1,256], index: 1, kind: input, shape index: {}]
  %s2 = inlined_call_operand.vmem [shape: f32[32,9], index: 2, kind: input, shape index: {}]
  %s3 = inlined_call_operand.vmem [shape: f32[32,1], index: 3, kind: input, shape index: {}]
  %s4 = inlined_call_operand.vmem [shape: f32[32,1], index: 4, kind: input, shape index: {}]
  %s5 = inlined_call_operand.vmem [shape: f32[32,288], index: 5, kind: input, shape index: {}]
  %s6 = inlined_call_operand.vmem [shape: f32[32,1], index: 6, kind: input, shape index: {}]
  %s7 = inlined_call_operand.vmem [shape: f32[32,1], index: 7, kind: input, shape index: {}]
  %s8 = inlined_call_operand.vmem [shape: f32[32,32], index: 8, kind: input, shape index: {}]
  %s9 = inlined_call_operand.vmem [shape: f32[32,1], index: 9, kind: input, shape index: {}]
  %s10 = inlined_call_operand.vmem [shape: f32[32,1], index: 10, kind: input, shape index: {}]
  %s11 = inlined_call_operand.hbm [shape: f32[2,32,256], index: 11, kind: output, shape index: {}]
  %s12 = sld [smem:[#allocation0]]
  $region81: #{tpu_custom_call.1} parent=0
    _
  %s14 = ssub.s32 1, %s12
  %s15 = scalar_select 0, %s14, %s12
  $region1: #{tpu_custom_call.1} parent=0
    #allocation2 [shape = 'u8[1024]{0}', space=vmem, size = 0x400, scoped, tag = 'input window, operand 1, single buffered']
    #allocation3 [shape = 's32[2]{0}', space=sflag, size = 0x8, scoped, tag = 'scoped memory for tpu_custom_call.1']
    #allocation4 [shape = 's32[2]{0}', space=sflag, size = 0x8, scoped, tag = 'scoped memory for tpu_custom_call.1']
    #allocation5 [shape = 'u8[65536]{0}', space=vmem, size = 0x10000, scoped, tag = 'output window, operand 0']
    %16 = vsyncpa [#allocation3], 0
    %17 = vsyncpa [#allocation4], 0
    %s18 = scalar_lea.sflag [#allocation4], 1
    %19 = vsyncpa %s18, 0
    loop: start=0, step=1, limit=4
    $region2: #{tpu_custom_call.1} parent=1 // loop_pre_header
      _
    $region3: #{tpu_custom_call.1} parent=1 // loop_header
      %s21 = sphi 0, %s25
      %p22 = scmp.ge.s32.totalorder %s21, 4
      %s31 = sphi 0, %s33
      %s34 = sphi 0, %s31
      %s35 = sphi 0, %s34
      %s51 = sphi 0, %s35
      %s55 = sphi 0, %s55
      %s57 = sphi 0, %s55
      %s58 = sphi 0, %s57
      %s72 = sphi 0, %s58
      %s76 = sphi 0, %s76
      %s78 = sphi 0, %s76
      %s79 = sphi 0, %s78
      %s93 = sphi 0, %s79
      %s97 = sphi 0, %s97
      %s99 = sphi 0, %s97
      %s100 = sphi 0, %s99
      %s114 = sphi 0, %s100
      %s118 = sphi 0, %s118
      %s120 = sphi 0, %s118
      %s121 = sphi 0, %s120
      %s135 = sphi 0, %s121
      %s139 = sphi 0, %s139
      %s141 = sphi 0, %s139
      %s142 = sphi 0, %s141
      %s156 = sphi 0, %s142
      %s160 = sphi 0, %s160
      %s162 = sphi 0, %s160
      %s163 = sphi 0, %s162
      %s177 = sphi 0, %s163
      %s181 = sphi 0, %s181
      %s183 = sphi 0, %s181
      %s184 = sphi 0, %s183
      %s198 = sphi 0, %s184
      %s202 = sphi 0, %s202
      %s204 = sphi 0, %s202
      %s205 = sphi 0, %s204
      %s219 = sphi 0, %s205
      %s223 = sphi 0, %s223
      %s225 = sphi 0, %s223
      %s226 = sphi 0, %s225
      %s240 = sphi 0, %s226
      %s244 = sphi 0, %s244
      %s246 = sphi 0, %s244
      %s247 = sphi 0, %s246
      %s261 = sphi 0, %s247
      %s267 = sphi 0, %s269
      %s270 = sphi 0, %s267
      %s271 = sphi 0, %s270
      %s287 = sphi 0, %s271
    $region4: #{tpu_custom_call.1} parent=1 // loop_header_branch
      %24 = sbr.rel (%p22) target = $region8
    $region5: #{tpu_custom_call.1} parent=1 // loop_body
      %s26 = ssub.s32 %s21, 1
      %s27 = ssub.s32 %s21, 2
      %s28 = sadd.s32 %s21, 1
      %s29 = ssub.s32 %s21, %s28
      %p30 = scmp.eq.s32.totalorder %s29, 0
      %s32 = sadd.s32 %s31, 1
      %s33 = scalar_select %p30, %s31, %s32
      %p36 = pneg %p30
      %p37 = scmp.eq.s32.totalorder %s21, 1
      %p38 = por %p36, %p37
      %p39 = scmp.ne.s32.totalorder %s31, %s34
      %p40 = scmp.eq.s32.totalorder %s21, 0
      %p41 = por %p39, %p40
      %p42 = scmp.ne.s32.totalorder %s31, %s34
      %p43 = scmp.eq.s32.totalorder %s26, 1
      %p44 = por %p42, %p43
      %p45 = scmp.ne.s32.totalorder %s34, %s35
      %p46 = scmp.eq.s32.totalorder %s26, 0
      %p47 = por %p45, %p46
      %p48 = scmp.ne.s32.totalorder %s34, %s35
      %p49 = scmp.eq.s32.totalorder %s27, 1
      %p50 = por %p48, %p49
      %p52 = scmp.ne.s32.totalorder %s35, %s51
      %p53 = scmp.eq.s32.totalorder %s27, 0
      %p54 = por %p52, %p53
      %s56 = sadd.s32 %s55, 1
      %p59 = scmp.eq.s32.totalorder %s21, 1
      %p60 = scmp.ne.s32.totalorder %s55, %s57
      %p61 = scmp.eq.s32.totalorder %s21, 0
      %p62 = por %p60, %p61
      %p63 = scmp.ne.s32.totalorder %s55, %s57
      %p64 = scmp.eq.s32.totalorder %s26, 1
      %p65 = por %p63, %p64
      %p66 = scmp.ne.s32.totalorder %s57, %s58
      %p67 = scmp.eq.s32.totalorder %s26, 0
      %p68 = por %p66, %p67
      %p69 = scmp.ne.s32.totalorder %s57, %s58
      %p70 = scmp.eq.s32.totalorder %s27, 1
      %p71 = por %p69, %p70
      %p73 = scmp.ne.s32.totalorder %s58, %s72
      %p74 = scmp.eq.s32.totalorder %s27, 0
      %p75 = por %p73, %p74
      %s77 = sadd.s32 %s76, 1
      %p80 = scmp.eq.s32.totalorder %s21, 1
      %p81 = scmp.ne.s32.totalorder %s76, %s78
      %p82 = scmp.eq.s32.totalorder %s21, 0
      %p83 = por %p81, %p82
      %p84 = scmp.ne.s32.totalorder %s76, %s78
      %p85 = scmp.eq.s32.totalorder %s26, 1
      %p86 = por %p84, %p85
      %p87 = scmp.ne.s32.totalorder %s78, %s79
      %p88 = scmp.eq.s32.totalorder %s26, 0
      %p89 = por %p87, %p88
      %p90 = scmp.ne.s32.totalorder %s78, %s79
      %p91 = scmp.eq.s32.totalorder %s27, 1
      %p92 = por %p90, %p91
      %p94 = scmp.ne.s32.totalorder %s79, %s93
      %p95 = scmp.eq.s32.totalorder %s27, 0
      %p96 = por %p94, %p95
      %s98 = sadd.s32 %s97, 1
      %p101 = scmp.eq.s32.totalorder %s21, 1
      %p102 = scmp.ne.s32.totalorder %s97, %s99
      %p103 = scmp.eq.s32.totalorder %s21, 0
      %p104 = por %p102, %p103
      %p105 = scmp.ne.s32.totalorder %s97, %s99
      %p106 = scmp.eq.s32.totalorder %s26, 1
      %p107 = por %p105, %p106
      %p108 = scmp.ne.s32.totalorder %s99, %s100
      %p109 = scmp.eq.s32.totalorder %s26, 0
      %p110 = por %p108, %p109
      %p111 = scmp.ne.s32.totalorder %s99, %s100
      %p112 = scmp.eq.s32.totalorder %s27, 1
      %p113 = por %p111, %p112
      %p115 = scmp.ne.s32.totalorder %s100, %s114
      %p116 = scmp.eq.s32.totalorder %s27, 0
      %p117 = por %p115, %p116
      %s119 = sadd.s32 %s118, 1
      %p122 = scmp.eq.s32.totalorder %s21, 1
      %p123 = scmp.ne.s32.totalorder %s118, %s120
      %p124 = scmp.eq.s32.totalorder %s21, 0
      %p125 = por %p123, %p124
      %p126 = scmp.ne.s32.totalorder %s118, %s120
      %p127 = scmp.eq.s32.totalorder %s26, 1
      %p128 = por %p126, %p127
      %p129 = scmp.ne.s32.totalorder %s120, %s121
      %p130 = scmp.eq.s32.totalorder %s26, 0
      %p131 = por %p129, %p130
      %p132 = scmp.ne.s32.totalorder %s120, %s121
      %p133 = scmp.eq.s32.totalorder %s27, 1
      %p134 = por %p132, %p133
      %p136 = scmp.ne.s32.totalorder %s121, %s135
      %p137 = scmp.eq.s32.totalorder %s27, 0
      %p138 = por %p136, %p137
      %s140 = sadd.s32 %s139, 1
      %p143 = scmp.eq.s32.totalorder %s21, 1
      %p144 = scmp.ne.s32.totalorder %s139, %s141
      %p145 = scmp.eq.s32.totalorder %s21, 0
      %p146 = por %p144, %p145
      %p147 = scmp.ne.s32.totalorder %s139, %s141
      %p148 = scmp.eq.s32.totalorder %s26, 1
      %p149 = por %p147, %p148
      %p150 = scmp.ne.s32.totalorder %s141, %s142
      %p151 = scmp.eq.s32.totalorder %s26, 0
      %p152 = por %p150, %p151
      %p153 = scmp.ne.s32.totalorder %s141, %s142
      %p154 = scmp.eq.s32.totalorder %s27, 1
      %p155 = por %p153, %p154
      %p157 = scmp.ne.s32.totalorder %s142, %s156
      %p158 = scmp.eq.s32.totalorder %s27, 0
      %p159 = por %p157, %p158
      %s161 = sadd.s32 %s160, 1
      %p164 = scmp.eq.s32.totalorder %s21, 1
      %p165 = scmp.ne.s32.totalorder %s160, %s162
      %p166 = scmp.eq.s32.totalorder %s21, 0
      %p167 = por %p165, %p166
      %p168 = scmp.ne.s32.totalorder %s160, %s162
      %p169 = scmp.eq.s32.totalorder %s26, 1
      %p170 = por %p168, %p169
      %p171 = scmp.ne.s32.totalorder %s162, %s163
      %p172 = scmp.eq.s32.totalorder %s26, 0
      %p173 = por %p171, %p172
      %p174 = scmp.ne.s32.totalorder %s162, %s163
      %p175 = scmp.eq.s32.totalorder %s27, 1
      %p176 = por %p174, %p175
      %p178 = scmp.ne.s32.totalorder %s163, %s177
      %p179 = scmp.eq.s32.totalorder %s27, 0
      %p180 = por %p178, %p179
      %s182 = sadd.s32 %s181, 1
      %p185 = scmp.eq.s32.totalorder %s21, 1
      %p186 = scmp.ne.s32.totalorder %s181, %s183
      %p187 = scmp.eq.s32.totalorder %s21, 0
      %p188 = por %p186, %p187
      %p189 = scmp.ne.s32.totalorder %s181, %s183
      %p190 = scmp.eq.s32.totalorder %s26, 1
      %p191 = por %p189, %p190
      %p192 = scmp.ne.s32.totalorder %s183, %s184
      %p193 = scmp.eq.s32.totalorder %s26, 0
      %p194 = por %p192, %p193
      %p195 = scmp.ne.s32.totalorder %s183, %s184
      %p196 = scmp.eq.s32.totalorder %s27, 1
      %p197 = por %p195, %p196
      %p199 = scmp.ne.s32.totalorder %s184, %s198
      %p200 = scmp.eq.s32.totalorder %s27, 0
      %p201 = por %p199, %p200
      %s203 = sadd.s32 %s202, 1
      %p206 = scmp.eq.s32.totalorder %s21, 1
      %p207 = scmp.ne.s32.totalorder %s202, %s204
      %p208 = scmp.eq.s32.totalorder %s21, 0
      %p209 = por %p207, %p208
      %p210 = scmp.ne.s32.totalorder %s202, %s204
      %p211 = scmp.eq.s32.totalorder %s26, 1
      %p212 = por %p210, %p211
      %p213 = scmp.ne.s32.totalorder %s204, %s205
      %p214 = scmp.eq.s32.totalorder %s26, 0
      %p215 = por %p213, %p214
      %p216 = scmp.ne.s32.totalorder %s204, %s205
      %p217 = scmp.eq.s32.totalorder %s27, 1
      %p218 = por %p216, %p217
      %p220 = scmp.ne.s32.totalorder %s205, %s219
      %p221 = scmp.eq.s32.totalorder %s27, 0
      %p222 = por %p220, %p221
      %s224 = sadd.s32 %s223, 1
      %p227 = scmp.eq.s32.totalorder %s21, 1
      %p228 = scmp.ne.s32.totalorder %s223, %s225
      %p229 = scmp.eq.s32.totalorder %s21, 0
      %p230 = por %p228, %p229
      %p231 = scmp.ne.s32.totalorder %s223, %s225
      %p232 = scmp.eq.s32.totalorder %s26, 1
      %p233 = por %p231, %p232
      %p234 = scmp.ne.s32.totalorder %s225, %s226
      %p235 = scmp.eq.s32.totalorder %s26, 0
      %p236 = por %p234, %p235
      %p237 = scmp.ne.s32.totalorder %s225, %s226
      %p238 = scmp.eq.s32.totalorder %s27, 1
      %p239 = por %p237, %p238
      %p241 = scmp.ne.s32.totalorder %s226, %s240
      %p242 = scmp.eq.s32.totalorder %s27, 0
      %p243 = por %p241, %p242
      %s245 = sadd.s32 %s244, 1
      %p248 = scmp.eq.s32.totalorder %s21, 1
      %p249 = scmp.ne.s32.totalorder %s244, %s246
      %p250 = scmp.eq.s32.totalorder %s21, 0
      %p251 = por %p249, %p250
      %p252 = scmp.ne.s32.totalorder %s244, %s246
      %p253 = scmp.eq.s32.totalorder %s26, 1
      %p254 = por %p252, %p253
      %p255 = scmp.ne.s32.totalorder %s246, %s247
      %p256 = scmp.eq.s32.totalorder %s26, 0
      %p257 = por %p255, %p256
      %p258 = scmp.ne.s32.totalorder %s246, %s247
      %p259 = scmp.eq.s32.totalorder %s27, 1
      %p260 = por %p258, %p259
      %p262 = scmp.ne.s32.totalorder %s247, %s261
      %p263 = scmp.eq.s32.totalorder %s27, 0
      %p264 = por %p262, %p263
      %s265 = ssub.s32 %s21, %s28
      %p266 = scmp.eq.s32.totalorder %s265, 0
      %s268 = sadd.s32 %s267, 1
      %s269 = scalar_select %p266, %s267, %s268
      %p272 = pneg %p266
      %p273 = scmp.eq.s32.totalorder %s21, 1
      %p274 = por %p272, %p273
      %p275 = scmp.ne.s32.totalorder %s267, %s270
      %p276 = scmp.eq.s32.totalorder %s21, 0
      %p277 = por %p275, %p276
      %p278 = scmp.ne.s32.totalorder %s267, %s270
      %p279 = scmp.eq.s32.totalorder %s26, 1
      %p280 = por %p278, %p279
      %p281 = scmp.ne.s32.totalorder %s270, %s271
      %p282 = scmp.eq.s32.totalorder %s26, 0
      %p283 = por %p281, %p282
      %p284 = scmp.ne.s32.totalorder %s270, %s271
      %p285 = scmp.eq.s32.totalorder %s27, 1
      %p286 = por %p284, %p285
      %p288 = scmp.ne.s32.totalorder %s271, %s287
      %p289 = scmp.eq.s32.totalorder %s27, 0
      %p290 = por %p288, %p289
      %p291 = scmp.le.s32.totalorder 1, %s21
      %p292 = scmp.lt.s32.totalorder %s21, 3
      %p293 = pnand %p291, %p292
      %p294 = pneg %p293
      // Predicated region
      $region9: #{tpu_custom_call.1} parent=5 // pred_check
        _
      $region10: #{tpu_custom_call.1} parent=5 // pred_check_branch
        %296 = sbr.rel (%p293) target = $region12
      $region11: #{tpu_custom_call.1} parent=5 // pred_region
        %s297 = ssub.s32 %s21, 1
        // Predicated region
        $region13: #{tpu_custom_call.1} parent=11 // pred_check
          %p298 = pneg %p68
        $region14: #{tpu_custom_call.1} parent=11 // pred_check_branch
          %300 = sbr.rel (%p298) target = $region16
        $region15: #{tpu_custom_call.1} parent=11 // pred_region
          %s302 = ssub.s32 32, 32
          %303 = vsyncadd [#allocation3], %s302
          %s305 = sshll.u32 [#allocation2], 4
          %s306 = int_to_ptr.vmem [resolvable:$true] %s305
          %308 = dma.hbm_to_vmem [thread:$0]  %s1, 32, %s306, [#allocation3]
        $region16: #{tpu_custom_call.1} parent=11 // pred_fallthru
          _
        // Predicated region
        $region17: #{tpu_custom_call.1} parent=11 // pred_check
          %p309 = pneg %p89
        $region18: #{tpu_custom_call.1} parent=11 // pred_check_branch
          %311 = sbr.rel (%p309) target = $region20
        $region19: #{tpu_custom_call.1} parent=11 // pred_region
          _
        $region20: #{tpu_custom_call.1} parent=11 // pred_fallthru
          _
        // Predicated region
        $region21: #{tpu_custom_call.1} parent=11 // pred_check
          %p312 = pneg %p110
        $region22: #{tpu_custom_call.1} parent=11 // pred_check_branch
          %314 = sbr.rel (%p312) target = $region24
        $region23: #{tpu_custom_call.1} parent=11 // pred_region
          _
        $region24: #{tpu_custom_call.1} parent=11 // pred_fallthru
          _
        // Predicated region
        $region25: #{tpu_custom_call.1} parent=11 // pred_check
          %p315 = pneg %p131
        $region26: #{tpu_custom_call.1} parent=11 // pred_check_branch
          %317 = sbr.rel (%p315) target = $region28
        $region27: #{tpu_custom_call.1} parent=11 // pred_region
          _
        $region28: #{tpu_custom_call.1} parent=11 // pred_fallthru
          _
        // Predicated region
        $region29: #{tpu_custom_call.1} parent=11 // pred_check
          %p318 = pneg %p152
        $region30: #{tpu_custom_call.1} parent=11 // pred_check_branch
          %320 = sbr.rel (%p318) target = $region32
        $region31: #{tpu_custom_call.1} parent=11 // pred_region
          _
        $region32: #{tpu_custom_call.1} parent=11 // pred_fallthru
          _
        // Predicated region
        $region33: #{tpu_custom_call.1} parent=11 // pred_check
          %p321 = pneg %p173
        $region34: #{tpu_custom_call.1} parent=11 // pred_check_branch
          %323 = sbr.rel (%p321) target = $region36
        $region35: #{tpu_custom_call.1} parent=11 // pred_region
          _
        $region36: #{tpu_custom_call.1} parent=11 // pred_fallthru
          _
        // Predicated region
        $region37: #{tpu_custom_call.1} parent=11 // pred_check
          %p324 = pneg %p194
        $region38: #{tpu_custom_call.1} parent=11 // pred_check_branch
          %326 = sbr.rel (%p324) target = $region40
        $region39: #{tpu_custom_call.1} parent=11 // pred_region
          _
        $region40: #{tpu_custom_call.1} parent=11 // pred_fallthru
          _
        // Predicated region
        $region41: #{tpu_custom_call.1} parent=11 // pred_check
          %p327 = pneg %p215
        $region42: #{tpu_custom_call.1} parent=11 // pred_check_branch
          %329 = sbr.rel (%p327) target = $region44
        $region43: #{tpu_custom_call.1} parent=11 // pred_region
          _
        $region44: #{tpu_custom_call.1} parent=11 // pred_fallthru
          _
        // Predicated region
        $region45: #{tpu_custom_call.1} parent=11 // pred_check
          %p330 = pneg %p236
        $region46: #{tpu_custom_call.1} parent=11 // pred_check_branch
          %332 = sbr.rel (%p330) target = $region48
        $region47: #{tpu_custom_call.1} parent=11 // pred_region
          _
        $region48: #{tpu_custom_call.1} parent=11 // pred_fallthru
          _
        // Predicated region
        $region49: #{tpu_custom_call.1} parent=11 // pred_check
          %p333 = pneg %p257
        $region50: #{tpu_custom_call.1} parent=11 // pred_check_branch
          %335 = sbr.rel (%p333) target = $region52
        $region51: #{tpu_custom_call.1} parent=11 // pred_region
          _
        $region52: #{tpu_custom_call.1} parent=11 // pred_fallthru
          _
      $region12: #{tpu_custom_call.1} parent=5 // pred_fallthru
        _
      %p336 = scmp.lt.s32.totalorder %s21, 2
      // Predicated region
      $region53: #{tpu_custom_call.1} parent=5 // pred_check
        %p337 = pneg %p336
      $region54: #{tpu_custom_call.1} parent=5 // pred_check_branch
        %339 = sbr.rel (%p337) target = $region56
      $region55: #{tpu_custom_call.1} parent=5 // pred_region
        // Predicated region
        $region57: #{tpu_custom_call.1} parent=55 // pred_check
          %p340 = pneg %p41
        $region58: #{tpu_custom_call.1} parent=55 // pred_check_branch
          %342 = sbr.rel (%p340) target = $region60
        $region59: #{tpu_custom_call.1} parent=55 // pred_region
          %p343 = scmp.lt.s32.totalorder %s21, 1
          %s344 = scalar_select %p343, %s21, 1
          %s345 = smul.addr %s344, 8
          %s346 = smul.addr %s345, 8
          %s347 = scalar_lea.vmem %s0, %s346
        $region60: #{tpu_custom_call.1} parent=55 // pred_fallthru
          _
      $region56: #{tpu_custom_call.1} parent=5 // pred_fallthru
        _
      %p348 = scmp.le.s32.totalorder 1, %s21
      %p349 = scmp.lt.s32.totalorder %s21, 3
      %p350 = pnand %p348, %p349
      %p351 = pneg %p350
      // Predicated region
      $region61: #{tpu_custom_call.1} parent=5 // pred_check
        _
      $region62: #{tpu_custom_call.1} parent=5 // pred_check_branch
        %353 = sbr.rel (%p350) target = $region64
      $region63: #{tpu_custom_call.1} parent=5 // pred_region
        %s354 = ssub.s32 %s21, 1
        // Predicated region
        $region65: #{tpu_custom_call.1} parent=63 // pred_check
          %p355 = pneg %p68
        $region66: #{tpu_custom_call.1} parent=63 // pred_check_branch
          %357 = sbr.rel (%p355) target = $region68
        $region67: #{tpu_custom_call.1} parent=63 // pred_region
          %358 = dma.done [#allocation3], 32
        $region68: #{tpu_custom_call.1} parent=63 // pred_fallthru
          _
        %p359 = scmp.lt.s32.totalorder %s26, 1
        %s360 = scalar_select %p359, %s26, 1
        %s361 = smul.addr %s360, 8
        %s362 = smul.addr %s361, 8
        %s363 = scalar_lea.vmem %s0, %s362
        %p364 = pneg %p47
        %p365 = pneg %p44
        %p366 = pneg %p68
        %p367 = pneg %p65
        %p368 = pneg %p89
        %p369 = pneg %p86
        %p370 = pneg %p110
        %p371 = pneg %p107
        %p372 = pneg %p131
        %p373 = pneg %p128
        %p374 = pneg %p152
        %p375 = pneg %p149
        %p376 = pneg %p173
        %p377 = pneg %p170
        %p378 = pneg %p194
        %p379 = pneg %p191
        %p380 = pneg %p215
        %p381 = pneg %p212
        %p382 = pneg %p236
        %p383 = pneg %p233
        %p384 = pneg %p257
        %p385 = pneg %p254
        %p386 = pneg %p283
        %p387 = pneg %p280
        %s388 = sand.u32 %s270, 1
        %s389 = scalar_lea.sflag [#allocation4], %s388
        %s390 = sand.u32 %s270, 1
        %s391 = smul.addr %s390, 64
        %s392 = scalar_lea.vmem [#allocation5], %s391
        %p393 = scmp.lt.s32.totalorder %s26, 1
        %s394 = scalar_select %p393, %s26, 1
        %s395 = smul.addr %s394, 8
        %s396 = smul.addr %s395, 8
        %s397 = scalar_lea.vmem %s0, %s396
        %v398 = vld [vmem:[%s397] sm:$0xff]
        %v399 = vld [vmem:[%s397 + $0x8] sm:$0xff]
        %v400 = vld [vmem:[%s397 + $0x10] sm:$0xff]
        %v401 = vld [vmem:[%s397 + $0x18] sm:$0xff]
        %v402 = vld [vmem:[%s397 + $0x20] sm:$0xff]
        %v403 = vld [vmem:[%s397 + $0x28] sm:$0xff]
        %v404 = vld [vmem:[%s397 + $0x30] sm:$0xff]
        %v405 = vld [vmem:[%s397 + $0x38] sm:$0xff]
        %v406 = vld [vmem:[#allocation2] sm:$0x3]
        %415 = vrot.lane.b32.xlu0 %v398, 17
        %v416 = vpop.permute.xlu0 %415
        %417 = vrot.lane.b32.xlu0 %v399, 17
        %v418 = vpop.permute.xlu0 %417
        %419 = vrot.lane.b32.xlu0 %v400, 17
        %v420 = vpop.permute.xlu0 %419
        %421 = vrot.lane.b32.xlu0 %v401, 17
        %v422 = vpop.permute.xlu0 %421
        %423 = vrot.lane.b32.xlu0 %v402, 17
        %v424 = vpop.permute.xlu0 %423
        %425 = vrot.lane.b32.xlu0 %v403, 17
        %v426 = vpop.permute.xlu0 %425
        %427 = vrot.lane.b32.xlu0 %v404, 17
        %v428 = vpop.permute.xlu0 %427
        %429 = vrot.lane.b32.xlu0 %v405, 17
        %v430 = vpop.permute.xlu0 %429
        %vm431 = vcmask 138240
        %v432 = vsel %vm431, %v416, %v418
        %v433 = vsel %vm431, %v420, %v422
        %v434 = vsel %vm431, %v424, %v426
        %v435 = vsel %vm431, %v428, %v430
        %v448 = vsel %vm431, 0.0, %v416
        %v449 = vsel %vm431, 0.0, %v420
        %v450 = vsel %vm431, 0.0, %v424
        %v451 = vsel %vm431, 0.0, %v428
        %v452 = vsel %vm431, %v418, 0.0
        %v453 = vsel %vm431, %v422, 0.0
        %v454 = vsel %vm431, %v426, 0.0
        %v455 = vsel %vm431, %v430, 0.0
        %v456 = vld [vmem:[%s2] sm:$0xff]
        %v457 = vld [vmem:[%s2 + $0x8] sm:$0xff]
        %v458 = vld [vmem:[%s2 + $0x10] sm:$0xff]
        %v459 = vld [vmem:[%s2 + $0x18] sm:$0xff]
        %461 = vset.pattern.permute.xlu0 0
        %462 = vperm.xlu0 %461, %v456
        %v463 = vpop.permute.xlu0 %462
        %466 = vset.pattern.permute.xlu0 0
        %467 = vperm.xlu0 %466, %v457
        %v468 = vpop.permute.xlu0 %467
        %471 = vset.pattern.permute.xlu0 0
        %472 = vperm.xlu0 %471, %v458
        %v473 = vpop.permute.xlu0 %472
        %476 = vset.pattern.permute.xlu0 0
        %477 = vperm.xlu0 %476, %v459
        %v478 = vpop.permute.xlu0 %477
        %v480 = vmul.f32 %v448, %v463
        %v481 = vmul.f32 %v432, %v463
        %v482 = vmul.f32 %v449, %v468
        %v483 = vmul.f32 %v433, %v468
        %v484 = vmul.f32 %v450, %v473
        %v485 = vmul.f32 %v434, %v473
        %v486 = vmul.f32 %v451, %v478
        %v487 = vmul.f32 %v435, %v478
        %v488 = vadd.f32 %v480, 0.0
        %v489 = vadd.f32 %v481, 0.0
        %v490 = vadd.f32 %v482, 0.0
        %v491 = vadd.f32 %v483, 0.0
        %v492 = vadd.f32 %v484, 0.0
        %v493 = vadd.f32 %v485, 0.0
        %v494 = vadd.f32 %v486, 0.0
        %v495 = vadd.f32 %v487, 0.0
        %496 = vset.pattern.permute.xlu0 3
        %497 = vperm.xlu0 %496, %v456
        %v498 = vpop.permute.xlu0 %497
        %500 = vset.pattern.permute.xlu0 3
        %501 = vperm.xlu0 %500, %v457
        %v502 = vpop.permute.xlu0 %501
        %504 = vset.pattern.permute.xlu0 3
        %505 = vperm.xlu0 %504, %v458
        %v506 = vpop.permute.xlu0 %505
        %508 = vset.pattern.permute.xlu0 3
        %509 = vperm.xlu0 %508, %v459
        %v510 = vpop.permute.xlu0 %509
        %v512 = vmul.f32 %v448, %v498
        %v513 = vmul.f32 %v432, %v498
        %v514 = vmul.f32 %v452, %v498
        %v515 = vmul.f32 %v449, %v502
        %v516 = vmul.f32 %v433, %v502
        %v517 = vmul.f32 %v453, %v502
        %v518 = vmul.f32 %v450, %v506
        %v519 = vmul.f32 %v434, %v506
        %v520 = vmul.f32 %v454, %v506
        %v521 = vmul.f32 %v451, %v510
        %v522 = vmul.f32 %v435, %v510
        %v523 = vmul.f32 %v455, %v510
        %536 = vrot.lane.b32.xlu0 %v512, 112
        %v537 = vpop.permute.xlu0 %536
        %538 = vrot.lane.b32.xlu0 %v513, 112
        %v539 = vpop.permute.xlu0 %538
        %540 = vrot.lane.b32.xlu0 %v514, 112
        %v541 = vpop.permute.xlu0 %540
        %542 = vrot.lane.b32.xlu0 %v515, 112
        %v543 = vpop.permute.xlu0 %542
        %544 = vrot.lane.b32.xlu0 %v516, 112
        %v545 = vpop.permute.xlu0 %544
        %546 = vrot.lane.b32.xlu0 %v517, 112
        %v547 = vpop.permute.xlu0 %546
        %548 = vrot.lane.b32.xlu0 %v518, 112
        %v549 = vpop.permute.xlu0 %548
        %550 = vrot.lane.b32.xlu0 %v519, 112
        %v551 = vpop.permute.xlu0 %550
        %552 = vrot.lane.b32.xlu0 %v520, 112
        %v553 = vpop.permute.xlu0 %552
        %554 = vrot.lane.b32.xlu0 %v521, 112
        %v555 = vpop.permute.xlu0 %554
        %556 = vrot.lane.b32.xlu0 %v522, 112
        %v557 = vpop.permute.xlu0 %556
        %558 = vrot.lane.b32.xlu0 %v523, 112
        %v559 = vpop.permute.xlu0 %558
        %vm560 = vcmask 916480
        %v561 = vsel %vm560, %v537, %v539
        %v562 = vsel %vm560, %v539, %v541
        %v563 = vsel %vm560, %v543, %v545
        %v564 = vsel %vm560, %v545, %v547
        %v565 = vsel %vm560, %v549, %v551
        %v566 = vsel %vm560, %v551, %v553
        %v567 = vsel %vm560, %v555, %v557
        %v568 = vsel %vm560, %v557, %v559
        %v577 = vadd.f32 %v488, %v561
        %v578 = vadd.f32 %v489, %v562
        %v579 = vadd.f32 %v490, %v563
        %v580 = vadd.f32 %v491, %v564
        %v581 = vadd.f32 %v492, %v565
        %v582 = vadd.f32 %v493, %v566
        %v583 = vadd.f32 %v494, %v567
        %v584 = vadd.f32 %v495, %v568
        %585 = vset.pattern.permute.xlu0 6
        %586 = vperm.xlu0 %585, %v456
        %v587 = vpop.permute.xlu0 %586
        %589 = vset.pattern.permute.xlu0 6
        %590 = vperm.xlu0 %589, %v457
        %v591 = vpop.permute.xlu0 %590
        %593 = vset.pattern.permute.xlu0 6
        %594 = vperm.xlu0 %593, %v458
        %v595 = vpop.permute.xlu0 %594
        %597 = vset.pattern.permute.xlu0 6
        %598 = vperm.xlu0 %597, %v459
        %v599 = vpop.permute.xlu0 %598
        %v601 = vmul.f32 %v448, %v587
        %v602 = vmul.f32 %v432, %v587
        %v603 = vmul.f32 %v452, %v587
        %v604 = vmul.f32 %v449, %v591
        %v605 = vmul.f32 %v433, %v591
        %v606 = vmul.f32 %v453, %v591
        %v607 = vmul.f32 %v450, %v595
        %v608 = vmul.f32 %v434, %v595
        %v609 = vmul.f32 %v454, %v595
        %v610 = vmul.f32 %v451, %v599
        %v611 = vmul.f32 %v435, %v599
        %v612 = vmul.f32 %v455, %v599
        %625 = vrot.lane.b32.xlu0 %v601, 96
        %v626 = vpop.permute.xlu0 %625
        %627 = vrot.lane.b32.xlu0 %v602, 96
        %v628 = vpop.permute.xlu0 %627
        %629 = vrot.lane.b32.xlu0 %v603, 96
        %v630 = vpop.permute.xlu0 %629
        %631 = vrot.lane.b32.xlu0 %v604, 96
        %v632 = vpop.permute.xlu0 %631
        %633 = vrot.lane.b32.xlu0 %v605, 96
        %v634 = vpop.permute.xlu0 %633
        %635 = vrot.lane.b32.xlu0 %v606, 96
        %v636 = vpop.permute.xlu0 %635
        %637 = vrot.lane.b32.xlu0 %v607, 96
        %v638 = vpop.permute.xlu0 %637
        %639 = vrot.lane.b32.xlu0 %v608, 96
        %v640 = vpop.permute.xlu0 %639
        %641 = vrot.lane.b32.xlu0 %v609, 96
        %v642 = vpop.permute.xlu0 %641
        %643 = vrot.lane.b32.xlu0 %v610, 96
        %v644 = vpop.permute.xlu0 %643
        %645 = vrot.lane.b32.xlu0 %v611, 96
        %v646 = vpop.permute.xlu0 %645
        %647 = vrot.lane.b32.xlu0 %v612, 96
        %v648 = vpop.permute.xlu0 %647
        %vm649 = vcmask 785408
        %v650 = vsel %vm649, %v626, %v628
        %v651 = vsel %vm649, %v628, %v630
        %v652 = vsel %vm649, %v632, %v634
        %v653 = vsel %vm649, %v634, %v636
        %v654 = vsel %vm649, %v638, %v640
        %v655 = vsel %vm649, %v640, %v642
        %v656 = vsel %vm649, %v644, %v646
        %v657 = vsel %vm649, %v646, %v648
        %v666 = vadd.f32 %v577, %v650
        %v667 = vadd.f32 %v578, %v651
        %v668 = vadd.f32 %v579, %v652
        %v669 = vadd.f32 %v580, %v653
        %v670 = vadd.f32 %v581, %v654
        %v671 = vadd.f32 %v582, %v655
        %v672 = vadd.f32 %v583, %v656
        %v673 = vadd.f32 %v584, %v657
        %vm674 = vcmp.ge.s32.totalorder %v406, 1
        %v675 = vsel %vm674, 1, 0
        %v676 = vlaneseq
        %v677 = vshrl.u32 %v676, 7
        %v678 = vsub.s32 0, %v677
        %v679 = vrot.slane %v675, %v678
        %v680 = vlaneseq
        %v681 = vshrl.u32 %v680, 7
        %v682 = vsub.s32 1, %v681
        %v683 = vrot.slane %v675, %v682
        %vm684 = vcmp.eq.s32.totalorder %v679, 1
        %vm685 = vcmp.eq.s32.totalorder %v683, 1
        %v686 = vsel %vm684, %v666, 0.0
        %v687 = vsel %vm685, %v667, 0.0
        %v688 = vsel %vm684, %v668, 0.0
        %v689 = vsel %vm685, %v669, 0.0
        %v690 = vsel %vm684, %v670, 0.0
        %v691 = vsel %vm685, %v671, 0.0
        %v692 = vsel %vm684, %v672, 0.0
        %v693 = vsel %vm685, %v673, 0.0
        %v694 = vadd.f32 %v686, 0.0
        %v695 = vadd.f32 %v687, 0.0
        %v696 = vadd.f32 %v688, 0.0
        %v697 = vadd.f32 %v689, 0.0
        %v698 = vadd.f32 %v690, 0.0
        %v699 = vadd.f32 %v691, 0.0
        %v700 = vadd.f32 %v692, 0.0
        %v701 = vadd.f32 %v693, 0.0
        %702 = vset.pattern.permute.xlu0 1
        %703 = vperm.xlu0 %702, %v456
        %v704 = vpop.permute.xlu0 %703
        %706 = vset.pattern.permute.xlu0 1
        %707 = vperm.xlu0 %706, %v457
        %v708 = vpop.permute.xlu0 %707
        %710 = vset.pattern.permute.xlu0 1
        %711 = vperm.xlu0 %710, %v458
        %v712 = vpop.permute.xlu0 %711
        %714 = vset.pattern.permute.xlu0 1
        %715 = vperm.xlu0 %714, %v459
        %v716 = vpop.permute.xlu0 %715
        %v718 = vmul.f32 %v448, %v704
        %v719 = vmul.f32 %v432, %v704
        %v720 = vmul.f32 %v452, %v704
        %v721 = vmul.f32 %v449, %v708
        %v722 = vmul.f32 %v433, %v708
        %v723 = vmul.f32 %v453, %v708
        %v724 = vmul.f32 %v450, %v712
        %v725 = vmul.f32 %v434, %v712
        %v726 = vmul.f32 %v454, %v712
        %v727 = vmul.f32 %v451, %v716
        %v728 = vmul.f32 %v435, %v716
        %v729 = vmul.f32 %v455, %v716
        %v730 = vadd.f32 %v718, 0.0
        %v731 = vadd.f32 %v719, 0.0
        %v732 = vadd.f32 %v720, 0.0
        %v733 = vadd.f32 %v721, 0.0
        %v734 = vadd.f32 %v722, 0.0
        %v735 = vadd.f32 %v723, 0.0
        %v736 = vadd.f32 %v724, 0.0
        %v737 = vadd.f32 %v725, 0.0
        %v738 = vadd.f32 %v726, 0.0
        %v739 = vadd.f32 %v727, 0.0
        %v740 = vadd.f32 %v728, 0.0
        %v741 = vadd.f32 %v729, 0.0
        %742 = vset.pattern.permute.xlu0 4
        %743 = vperm.xlu0 %742, %v456
        %v744 = vpop.permute.xlu0 %743
        %746 = vset.pattern.permute.xlu0 4
        %747 = vperm.xlu0 %746, %v457
        %v748 = vpop.permute.xlu0 %747
        %750 = vset.pattern.permute.xlu0 4
        %751 = vperm.xlu0 %750, %v458
        %v752 = vpop.permute.xlu0 %751
        %754 = vset.pattern.permute.xlu0 4
        %755 = vperm.xlu0 %754, %v459
        %v756 = vpop.permute.xlu0 %755
        %v758 = vmul.f32 %v448, %v744
        %v759 = vmul.f32 %v432, %v744
        %v760 = vmul.f32 %v452, %v744
        %v761 = vmul.f32 %v449, %v748
        %v762 = vmul.f32 %v433, %v748
        %v763 = vmul.f32 %v453, %v748
        %v764 = vmul.f32 %v450, %v752
        %v765 = vmul.f32 %v434, %v752
        %v766 = vmul.f32 %v454, %v752
        %v767 = vmul.f32 %v451, %v756
        %v768 = vmul.f32 %v435, %v756
        %v769 = vmul.f32 %v455, %v756
        %782 = vrot.lane.b32.xlu0 %v758, 112
        %v783 = vpop.permute.xlu0 %782
        %784 = vrot.lane.b32.xlu0 %v759, 112
        %v785 = vpop.permute.xlu0 %784
        %786 = vrot.lane.b32.xlu0 %v760, 112
        %v787 = vpop.permute.xlu0 %786
        %788 = vrot.lane.b32.xlu0 %v761, 112
        %v789 = vpop.permute.xlu0 %788
        %790 = vrot.lane.b32.xlu0 %v762, 112
        %v791 = vpop.permute.xlu0 %790
        %792 = vrot.lane.b32.xlu0 %v763, 112
        %v793 = vpop.permute.xlu0 %792
        %794 = vrot.lane.b32.xlu0 %v764, 112
        %v795 = vpop.permute.xlu0 %794
        %796 = vrot.lane.b32.xlu0 %v765, 112
        %v797 = vpop.permute.xlu0 %796
        %798 = vrot.lane.b32.xlu0 %v766, 112
        %v799 = vpop.permute.xlu0 %798
        %800 = vrot.lane.b32.xlu0 %v767, 112
        %v801 = vpop.permute.xlu0 %800
        %802 = vrot.lane.b32.xlu0 %v768, 112
        %v803 = vpop.permute.xlu0 %802
        %804 = vrot.lane.b32.xlu0 %v769, 112
        %v805 = vpop.permute.xlu0 %804
        %v806 = vsel %vm560, %v783, %v785
        %v807 = vsel %vm560, %v785, %v787
        %v808 = vsel %vm560, %v789, %v791
        %v809 = vsel %vm560, %v791, %v793
        %v810 = vsel %vm560, %v795, %v797
        %v811 = vsel %vm560, %v797, %v799
        %v812 = vsel %vm560, %v801, %v803
        %v813 = vsel %vm560, %v803, %v805
        %v826 = vadd.f32 %v730, %v806
        %v827 = vadd.f32 %v731, %v807
        %v828 = vadd.f32 %v732, %v787
        %v829 = vadd.f32 %v733, %v808
        %v830 = vadd.f32 %v734, %v809
        %v831 = vadd.f32 %v735, %v793
        %v832 = vadd.f32 %v736, %v810
        %v833 = vadd.f32 %v737, %v811
        %v834 = vadd.f32 %v738, %v799
        %v835 = vadd.f32 %v739, %v812
        %v836 = vadd.f32 %v740, %v813
        %v837 = vadd.f32 %v741, %v805
        %838 = vset.pattern.permute.xlu0 7
        %839 = vperm.xlu0 %838, %v456
        %v840 = vpop.permute.xlu0 %839
        %842 = vset.pattern.permute.xlu0 7
        %843 = vperm.xlu0 %842, %v457
        %v844 = vpop.permute.xlu0 %843
        %846 = vset.pattern.permute.xlu0 7
        %847 = vperm.xlu0 %846, %v458
        %v848 = vpop.permute.xlu0 %847
        %850 = vset.pattern.permute.xlu0 7
        %851 = vperm.xlu0 %850, %v459
        %v852 = vpop.permute.xlu0 %851
        %v854 = vmul.f32 %v448, %v840
        %v855 = vmul.f32 %v432, %v840
        %v856 = vmul.f32 %v452, %v840
        %v857 = vmul.f32 %v449, %v844
        %v858 = vmul.f32 %v433, %v844
        %v859 = vmul.f32 %v453, %v844
        %v860 = vmul.f32 %v450, %v848
        %v861 = vmul.f32 %v434, %v848
        %v862 = vmul.f32 %v454, %v848
        %v863 = vmul.f32 %v451, %v852
        %v864 = vmul.f32 %v435, %v852
        %v865 = vmul.f32 %v455, %v852
        %878 = vrot.lane.b32.xlu0 %v854, 96
        %v879 = vpop.permute.xlu0 %878
        %880 = vrot.lane.b32.xlu0 %v855, 96
        %v881 = vpop.permute.xlu0 %880
        %882 = vrot.lane.b32.xlu0 %v856, 96
        %v883 = vpop.permute.xlu0 %882
        %884 = vrot.lane.b32.xlu0 %v857, 96
        %v885 = vpop.permute.xlu0 %884
        %886 = vrot.lane.b32.xlu0 %v858, 96
        %v887 = vpop.permute.xlu0 %886
        %888 = vrot.lane.b32.xlu0 %v859, 96
        %v889 = vpop.permute.xlu0 %888
        %890 = vrot.lane.b32.xlu0 %v860, 96
        %v891 = vpop.permute.xlu0 %890
        %892 = vrot.lane.b32.xlu0 %v861, 96
        %v893 = vpop.permute.xlu0 %892
        %894 = vrot.lane.b32.xlu0 %v862, 96
        %v895 = vpop.permute.xlu0 %894
        %896 = vrot.lane.b32.xlu0 %v863, 96
        %v897 = vpop.permute.xlu0 %896
        %898 = vrot.lane.b32.xlu0 %v864, 96
        %v899 = vpop.permute.xlu0 %898
        %900 = vrot.lane.b32.xlu0 %v865, 96
        %v901 = vpop.permute.xlu0 %900
        %v902 = vsel %vm649, %v879, %v881
        %v903 = vsel %vm649, %v881, %v883
        %v904 = vsel %vm649, %v885, %v887
        %v905 = vsel %vm649, %v887, %v889
        %v906 = vsel %vm649, %v891, %v893
        %v907 = vsel %vm649, %v893, %v895
        %v908 = vsel %vm649, %v897, %v899
        %v909 = vsel %vm649, %v899, %v901
        %v922 = vadd.f32 %v826, %v902
        %v923 = vadd.f32 %v827, %v903
        %v924 = vadd.f32 %v828, %v883
        %v925 = vadd.f32 %v829, %v904
        %v926 = vadd.f32 %v830, %v905
        %v927 = vadd.f32 %v831, %v889
        %v928 = vadd.f32 %v832, %v906
        %v929 = vadd.f32 %v833, %v907
        %v930 = vadd.f32 %v834, %v895
        %v931 = vadd.f32 %v835, %v908
        %v932 = vadd.f32 %v836, %v909
        %v933 = vadd.f32 %v837, %v901
        %946 = vrot.lane.b32.xlu0 %v922, 127
        %v947 = vpop.permute.xlu0 %946
        %948 = vrot.lane.b32.xlu0 %v923, 127
        %v949 = vpop.permute.xlu0 %948
        %950 = vrot.lane.b32.xlu0 %v924, 127
        %v951 = vpop.permute.xlu0 %950
        %952 = vrot.lane.b32.xlu0 %v925, 127
        %v953 = vpop.permute.xlu0 %952
        %954 = vrot.lane.b32.xlu0 %v926, 127
        %v955 = vpop.permute.xlu0 %954
        %956 = vrot.lane.b32.xlu0 %v927, 127
        %v957 = vpop.permute.xlu0 %956
        %958 = vrot.lane.b32.xlu0 %v928, 127
        %v959 = vpop.permute.xlu0 %958
        %960 = vrot.lane.b32.xlu0 %v929, 127
        %v961 = vpop.permute.xlu0 %960
        %962 = vrot.lane.b32.xlu0 %v930, 127
        %v963 = vpop.permute.xlu0 %962
        %964 = vrot.lane.b32.xlu0 %v931, 127
        %v965 = vpop.permute.xlu0 %964
        %966 = vrot.lane.b32.xlu0 %v932, 127
        %v967 = vpop.permute.xlu0 %966
        %968 = vrot.lane.b32.xlu0 %v933, 127
        %v969 = vpop.permute.xlu0 %968
        %vm970 = vcmask 1039360
        %v971 = vsel %vm970, %v947, %v949
        %v972 = vsel %vm970, %v949, %v951
        %v973 = vsel %vm970, %v953, %v955
        %v974 = vsel %vm970, %v955, %v957
        %v975 = vsel %vm970, %v959, %v961
        %v976 = vsel %vm970, %v961, %v963
        %v977 = vsel %vm970, %v965, %v967
        %v978 = vsel %vm970, %v967, %v969
        %v987 = vadd.f32 %v694, %v971
        %v988 = vadd.f32 %v695, %v972
        %v989 = vadd.f32 %v696, %v973
        %v990 = vadd.f32 %v697, %v974
        %v991 = vadd.f32 %v698, %v975
        %v992 = vadd.f32 %v699, %v976
        %v993 = vadd.f32 %v700, %v977
        %v994 = vadd.f32 %v701, %v978
        %995 = vset.pattern.permute.xlu0 2
        %996 = vperm.xlu0 %995, %v456
        %v997 = vpop.permute.xlu0 %996
        %999 = vset.pattern.permute.xlu0 2
        %1000 = vperm.xlu0 %999, %v457
        %v1001 = vpop.permute.xlu0 %1000
        %1003 = vset.pattern.permute.xlu0 2
        %1004 = vperm.xlu0 %1003, %v458
        %v1005 = vpop.permute.xlu0 %1004
        %1007 = vset.pattern.permute.xlu0 2
        %1008 = vperm.xlu0 %1007, %v459
        %v1009 = vpop.permute.xlu0 %1008
        %v1011 = vmul.f32 %v448, %v997
        %v1012 = vmul.f32 %v432, %v997
        %v1013 = vmul.f32 %v452, %v997
        %v1014 = vmul.f32 %v449, %v1001
        %v1015 = vmul.f32 %v433, %v1001
        %v1016 = vmul.f32 %v453, %v1001
        %v1017 = vmul.f32 %v450, %v1005
        %v1018 = vmul.f32 %v434, %v1005
        %v1019 = vmul.f32 %v454, %v1005
        %v1020 = vmul.f32 %v451, %v1009
        %v1021 = vmul.f32 %v435, %v1009
        %v1022 = vmul.f32 %v455, %v1009
        %v1023 = vadd.f32 %v1011, 0.0
        %v1024 = vadd.f32 %v1012, 0.0
        %v1025 = vadd.f32 %v1013, 0.0
        %v1026 = vadd.f32 %v1014, 0.0
        %v1027 = vadd.f32 %v1015, 0.0
        %v1028 = vadd.f32 %v1016, 0.0
        %v1029 = vadd.f32 %v1017, 0.0
        %v1030 = vadd.f32 %v1018, 0.0
        %v1031 = vadd.f32 %v1019, 0.0
        %v1032 = vadd.f32 %v1020, 0.0
        %v1033 = vadd.f32 %v1021, 0.0
        %v1034 = vadd.f32 %v1022, 0.0
        %1035 = vset.pattern.permute.xlu0 5
        %1036 = vperm.xlu0 %1035, %v456
        %v1037 = vpop.permute.xlu0 %1036
        %1039 = vset.pattern.permute.xlu0 5
        %1040 = vperm.xlu0 %1039, %v457
        %v1041 = vpop.permute.xlu0 %1040
        %1043 = vset.pattern.permute.xlu0 5
        %1044 = vperm.xlu0 %1043, %v458
        %v1045 = vpop.permute.xlu0 %1044
        %1047 = vset.pattern.permute.xlu0 5
        %1048 = vperm.xlu0 %1047, %v459
        %v1049 = vpop.permute.xlu0 %1048
        %v1051 = vmul.f32 %v448, %v1037
        %v1052 = vmul.f32 %v432, %v1037
        %v1053 = vmul.f32 %v452, %v1037
        %v1054 = vmul.f32 %v449, %v1041
        %v1055 = vmul.f32 %v433, %v1041
        %v1056 = vmul.f32 %v453, %v1041
        %v1057 = vmul.f32 %v450, %v1045
        %v1058 = vmul.f32 %v434, %v1045
        %v1059 = vmul.f32 %v454, %v1045
        %v1060 = vmul.f32 %v451, %v1049
        %v1061 = vmul.f32 %v435, %v1049
        %v1062 = vmul.f32 %v455, %v1049
        %1075 = vrot.lane.b32.xlu0 %v1051, 112
        %v1076 = vpop.permute.xlu0 %1075
        %1077 = vrot.lane.b32.xlu0 %v1052, 112
        %v1078 = vpop.permute.xlu0 %1077
        %1079 = vrot.lane.b32.xlu0 %v1053, 112
        %v1080 = vpop.permute.xlu0 %1079
        %1081 = vrot.lane.b32.xlu0 %v1054, 112
        %v1082 = vpop.permute.xlu0 %1081
        %1083 = vrot.lane.b32.xlu0 %v1055, 112
        %v1084 = vpop.permute.xlu0 %1083
        %1085 = vrot.lane.b32.xlu0 %v1056, 112
        %v1086 = vpop.permute.xlu0 %1085
        %1087 = vrot.lane.b32.xlu0 %v1057, 112
        %v1088 = vpop.permute.xlu0 %1087
        %1089 = vrot.lane.b32.xlu0 %v1058, 112
        %v1090 = vpop.permute.xlu0 %1089
        %1091 = vrot.lane.b32.xlu0 %v1059, 112
        %v1092 = vpop.permute.xlu0 %1091
        %1093 = vrot.lane.b32.xlu0 %v1060, 112
        %v1094 = vpop.permute.xlu0 %1093
        %1095 = vrot.lane.b32.xlu0 %v1061, 112
        %v1096 = vpop.permute.xlu0 %1095
        %1097 = vrot.lane.b32.xlu0 %v1062, 112
        %v1098 = vpop.permute.xlu0 %1097
        %v1099 = vsel %vm560, %v1076, %v1078
        %v1100 = vsel %vm560, %v1078, %v1080
        %v1101 = vsel %vm560, %v1082, %v1084
        %v1102 = vsel %vm560, %v1084, %v1086
        %v1103 = vsel %vm560, %v1088, %v1090
        %v1104 = vsel %vm560, %v1090, %v1092
        %v1105 = vsel %vm560, %v1094, %v1096
        %v1106 = vsel %vm560, %v1096, %v1098
        %v1119 = vadd.f32 %v1023, %v1099
        %v1120 = vadd.f32 %v1024, %v1100
        %v1121 = vadd.f32 %v1025, %v1080
        %v1122 = vadd.f32 %v1026, %v1101
        %v1123 = vadd.f32 %v1027, %v1102
        %v1124 = vadd.f32 %v1028, %v1086
        %v1125 = vadd.f32 %v1029, %v1103
        %v1126 = vadd.f32 %v1030, %v1104
        %v1127 = vadd.f32 %v1031, %v1092
        %v1128 = vadd.f32 %v1032, %v1105
        %v1129 = vadd.f32 %v1033, %v1106
        %v1130 = vadd.f32 %v1034, %v1098
        %1131 = vset.pattern.permute.xlu0 8
        %1132 = vperm.xlu0 %1131, %v456
        %v1133 = vpop.permute.xlu0 %1132
        %1135 = vset.pattern.permute.xlu0 8
        %1136 = vperm.xlu0 %1135, %v457
        %v1137 = vpop.permute.xlu0 %1136
        %1139 = vset.pattern.permute.xlu0 8
        %1140 = vperm.xlu0 %1139, %v458
        %v1141 = vpop.permute.xlu0 %1140
        %1143 = vset.pattern.permute.xlu0 8
        %1144 = vperm.xlu0 %1143, %v459
        %v1145 = vpop.permute.xlu0 %1144
        %v1147 = vmul.f32 %v448, %v1133
        %v1148 = vmul.f32 %v432, %v1133
        %v1149 = vmul.f32 %v452, %v1133
        %v1150 = vmul.f32 %v449, %v1137
        %v1151 = vmul.f32 %v433, %v1137
        %v1152 = vmul.f32 %v453, %v1137
        %v1153 = vmul.f32 %v450, %v1141
        %v1154 = vmul.f32 %v434, %v1141
        %v1155 = vmul.f32 %v454, %v1141
        %v1156 = vmul.f32 %v451, %v1145
        %v1157 = vmul.f32 %v435, %v1145
        %v1158 = vmul.f32 %v455, %v1145
        %1171 = vrot.lane.b32.xlu0 %v1147, 96
        %v1172 = vpop.permute.xlu0 %1171
        %1173 = vrot.lane.b32.xlu0 %v1148, 96
        %v1174 = vpop.permute.xlu0 %1173
        %1175 = vrot.lane.b32.xlu0 %v1149, 96
        %v1176 = vpop.permute.xlu0 %1175
        %1177 = vrot.lane.b32.xlu0 %v1150, 96
        %v1178 = vpop.permute.xlu0 %1177
        %1179 = vrot.lane.b32.xlu0 %v1151, 96
        %v1180 = vpop.permute.xlu0 %1179
        %1181 = vrot.lane.b32.xlu0 %v1152, 96
        %v1182 = vpop.permute.xlu0 %1181
        %1183 = vrot.lane.b32.xlu0 %v1153, 96
        %v1184 = vpop.permute.xlu0 %1183
        %1185 = vrot.lane.b32.xlu0 %v1154, 96
        %v1186 = vpop.permute.xlu0 %1185
        %1187 = vrot.lane.b32.xlu0 %v1155, 96
        %v1188 = vpop.permute.xlu0 %1187
        %1189 = vrot.lane.b32.xlu0 %v1156, 96
        %v1190 = vpop.permute.xlu0 %1189
        %1191 = vrot.lane.b32.xlu0 %v1157, 96
        %v1192 = vpop.permute.xlu0 %1191
        %1193 = vrot.lane.b32.xlu0 %v1158, 96
        %v1194 = vpop.permute.xlu0 %1193
        %v1195 = vsel %vm649, %v1172, %v1174
        %v1196 = vsel %vm649, %v1174, %v1176
        %v1197 = vsel %vm649, %v1178, %v1180
        %v1198 = vsel %vm649, %v1180, %v1182
        %v1199 = vsel %vm649, %v1184, %v1186
        %v1200 = vsel %vm649, %v1186, %v1188
        %v1201 = vsel %vm649, %v1190, %v1192
        %v1202 = vsel %vm649, %v1192, %v1194
        %v1215 = vadd.f32 %v1119, %v1195
        %v1216 = vadd.f32 %v1120, %v1196
        %v1217 = vadd.f32 %v1121, %v1176
        %v1218 = vadd.f32 %v1122, %v1197
        %v1219 = vadd.f32 %v1123, %v1198
        %v1220 = vadd.f32 %v1124, %v1182
        %v1221 = vadd.f32 %v1125, %v1199
        %v1222 = vadd.f32 %v1126, %v1200
        %v1223 = vadd.f32 %v1127, %v1188
        %v1224 = vadd.f32 %v1128, %v1201
        %v1225 = vadd.f32 %v1129, %v1202
        %v1226 = vadd.f32 %v1130, %v1194
        %vm1227 = vcmp.le.s32.totalorder %v406, 14
        %v1228 = vsel %vm1227, 1, 0
        %v1229 = vlaneseq
        %v1230 = vshrl.u32 %v1229, 7
        %v1231 = vsub.s32 0, %v1230
        %v1232 = vrot.slane %v1228, %v1231
        %v1233 = vlaneseq
        %v1234 = vshrl.u32 %v1233, 7
        %v1235 = vsub.s32 1, %v1234
        %v1236 = vrot.slane %v1228, %v1235
        %vm1237 = vcmp.eq.s32.totalorder %v1232, 1
        %vm1238 = vcmp.eq.s32.totalorder %v1236, 1
        %1251 = vrot.lane.b32.xlu0 %v1215, 126
        %v1252 = vpop.permute.xlu0 %1251
        %1253 = vrot.lane.b32.xlu0 %v1216, 126
        %v1254 = vpop.permute.xlu0 %1253
        %1255 = vrot.lane.b32.xlu0 %v1217, 126
        %v1256 = vpop.permute.xlu0 %1255
        %1257 = vrot.lane.b32.xlu0 %v1218, 126
        %v1258 = vpop.permute.xlu0 %1257
        %1259 = vrot.lane.b32.xlu0 %v1219, 126
        %v1260 = vpop.permute.xlu0 %1259
        %1261 = vrot.lane.b32.xlu0 %v1220, 126
        %v1262 = vpop.permute.xlu0 %1261
        %1263 = vrot.lane.b32.xlu0 %v1221, 126
        %v1264 = vpop.permute.xlu0 %1263
        %1265 = vrot.lane.b32.xlu0 %v1222, 126
        %v1266 = vpop.permute.xlu0 %1265
        %1267 = vrot.lane.b32.xlu0 %v1223, 126
        %v1268 = vpop.permute.xlu0 %1267
        %1269 = vrot.lane.b32.xlu0 %v1224, 126
        %v1270 = vpop.permute.xlu0 %1269
        %1271 = vrot.lane.b32.xlu0 %v1225, 126
        %v1272 = vpop.permute.xlu0 %1271
        %1273 = vrot.lane.b32.xlu0 %v1226, 126
        %v1274 = vpop.permute.xlu0 %1273
        %vm1275 = vcmask 1031168
        %v1276 = vsel %vm1275, %v1252, %v1254
        %v1277 = vsel %vm1275, %v1254, %v1256
        %v1278 = vsel %vm1275, %v1258, %v1260
        %v1279 = vsel %vm1275, %v1260, %v1262
        %v1280 = vsel %vm1275, %v1264, %v1266
        %v1281 = vsel %vm1275, %v1266, %v1268
        %v1282 = vsel %vm1275, %v1270, %v1272
        %v1283 = vsel %vm1275, %v1272, %v1274
        %v1292 = vsel %vm1237, %v1276, 0.0
        %v1293 = vsel %vm1238, %v1277, 0.0
        %v1294 = vsel %vm1237, %v1278, 0.0
        %v1295 = vsel %vm1238, %v1279, 0.0
        %v1296 = vsel %vm1237, %v1280, 0.0
        %v1297 = vsel %vm1238, %v1281, 0.0
        %v1298 = vsel %vm1237, %v1282, 0.0
        %v1299 = vsel %vm1238, %v1283, 0.0
        %v1300 = vadd.f32 %v987, %v1292
        %v1301 = vadd.f32 %v988, %v1293
        %v1302 = vadd.f32 %v989, %v1294
        %v1303 = vadd.f32 %v990, %v1295
        %v1304 = vadd.f32 %v991, %v1296
        %v1305 = vadd.f32 %v992, %v1297
        %v1306 = vadd.f32 %v993, %v1298
        %v1307 = vadd.f32 %v994, %v1299
        %v1308 = vld [vmem:[%s3] sm:$0xff]
        %v1309 = vld [vmem:[%s3 + $0x8] sm:$0xff]
        %v1310 = vld [vmem:[%s3 + $0x10] sm:$0xff]
        %v1311 = vld [vmem:[%s3 + $0x18] sm:$0xff]
        %1313 = vset.pattern.permute.xlu0 0
        %1314 = vperm.xlu0 %1313, %v1308
        %v1315 = vpop.permute.xlu0 %1314
        %1318 = vset.pattern.permute.xlu0 0
        %1319 = vperm.xlu0 %1318, %v1309
        %v1320 = vpop.permute.xlu0 %1319
        %1323 = vset.pattern.permute.xlu0 0
        %1324 = vperm.xlu0 %1323, %v1310
        %v1325 = vpop.permute.xlu0 %1324
        %1328 = vset.pattern.permute.xlu0 0
        %1329 = vperm.xlu0 %1328, %v1311
        %v1330 = vpop.permute.xlu0 %1329
        %v1332 = vmul.f32 %v1300, %v1315
        %v1333 = vmul.f32 %v1301, %v1315
        %v1334 = vmul.f32 %v1302, %v1320
        %v1335 = vmul.f32 %v1303, %v1320
        %v1336 = vmul.f32 %v1304, %v1325
        %v1337 = vmul.f32 %v1305, %v1325
        %v1338 = vmul.f32 %v1306, %v1330
        %v1339 = vmul.f32 %v1307, %v1330
        %v1340 = vld [vmem:[%s4] sm:$0xff]
        %v1341 = vld [vmem:[%s4 + $0x8] sm:$0xff]
        %v1342 = vld [vmem:[%s4 + $0x10] sm:$0xff]
        %v1343 = vld [vmem:[%s4 + $0x18] sm:$0xff]
        %1345 = vset.pattern.permute.xlu0 0
        %1346 = vperm.xlu0 %1345, %v1340
        %v1347 = vpop.permute.xlu0 %1346
        %1350 = vset.pattern.permute.xlu0 0
        %1351 = vperm.xlu0 %1350, %v1341
        %v1352 = vpop.permute.xlu0 %1351
        %1355 = vset.pattern.permute.xlu0 0
        %1356 = vperm.xlu0 %1355, %v1342
        %v1357 = vpop.permute.xlu0 %1356
        %1360 = vset.pattern.permute.xlu0 0
        %1361 = vperm.xlu0 %1360, %v1343
        %v1362 = vpop.permute.xlu0 %1361
        %v1364 = vadd.f32 %v1332, %v1347
        %v1365 = vadd.f32 %v1333, %v1347
        %v1366 = vadd.f32 %v1334, %v1352
        %v1367 = vadd.f32 %v1335, %v1352
        %v1368 = vadd.f32 %v1336, %v1357
        %v1369 = vadd.f32 %v1337, %v1357
        %v1370 = vadd.f32 %v1338, %v1362
        %v1371 = vadd.f32 %v1339, %v1362
        %v1372 = vmax.f32 %v1364, 0.0
        %v1373 = vmax.f32 %v1365, 0.0
        %v1374 = vmax.f32 %v1366, 0.0
        %v1375 = vmax.f32 %v1367, 0.0
        %v1376 = vmax.f32 %v1368, 0.0
        %v1377 = vmax.f32 %v1369, 0.0
        %v1378 = vmax.f32 %v1370, 0.0
        %v1379 = vmax.f32 %v1371, 0.0
        %1388 = vrot.lane.b32.xlu0 %v1372, 34
        %v1389 = vpop.permute.xlu0 %1388
        %1390 = vrot.lane.b32.xlu0 %v1373, 34
        %v1391 = vpop.permute.xlu0 %1390
        %1392 = vrot.lane.b32.xlu0 %v1374, 34
        %v1393 = vpop.permute.xlu0 %1392
        %1394 = vrot.lane.b32.xlu0 %v1375, 34
        %v1395 = vpop.permute.xlu0 %1394
        %1396 = vrot.lane.b32.xlu0 %v1376, 34
        %v1397 = vpop.permute.xlu0 %1396
        %1398 = vrot.lane.b32.xlu0 %v1377, 34
        %v1399 = vpop.permute.xlu0 %1398
        %1400 = vrot.lane.b32.xlu0 %v1378, 34
        %v1401 = vpop.permute.xlu0 %1400
        %1402 = vrot.lane.b32.xlu0 %v1379, 34
        %v1403 = vpop.permute.xlu0 %1402
        %vm1404 = vcmask 277504
        %v1405 = vsel %vm1404, %v1389, %v1391
        %v1406 = vsel %vm1404, %v1393, %v1395
        %v1407 = vsel %vm1404, %v1397, %v1399
        %v1408 = vsel %vm1404, %v1401, %v1403
        %v1421 = vsel %vm1404, 0.0, %v1389
        %v1422 = vsel %vm1404, 0.0, %v1393
        %v1423 = vsel %vm1404, 0.0, %v1397
        %v1424 = vsel %vm1404, 0.0, %v1401
        %v1425 = vsel %vm1404, %v1391, 0.0
        %v1426 = vsel %vm1404, %v1395, 0.0
        %v1427 = vsel %vm1404, %v1399, 0.0
        %v1428 = vsel %vm1404, %v1403, 0.0
        %vm1429 = vcmp.ge.s32.totalorder %v406, 2
        %v1430 = vsel %vm1429, 1, 0
        %v1431 = vlaneseq
        %v1432 = vshrl.u32 %v1431, 7
        %v1433 = vsub.s32 0, %v1432
        %v1434 = vrot.slane %v1430, %v1433
        %v1435 = vlaneseq
        %v1436 = vshrl.u32 %v1435, 7
        %v1437 = vsub.s32 1, %v1436
        %v1438 = vrot.slane %v1430, %v1437
        %vm1439 = vcmp.eq.s32.totalorder %v1434, 1
        %vm1440 = vcmp.eq.s32.totalorder %v1438, 1
        %v1441 = vsel %vm1439, %v1421, 0.0
        %v1442 = vsel %vm1440, %v1405, 0.0
        %v1443 = vsel %vm1439, %v1422, 0.0
        %v1444 = vsel %vm1440, %v1406, 0.0
        %v1445 = vsel %vm1439, %v1423, 0.0
        %v1446 = vsel %vm1440, %v1407, 0.0
        %v1447 = vsel %vm1439, %v1424, 0.0
        %v1448 = vsel %vm1440, %v1408, 0.0
        %vm1449 = vcmp.le.s32.totalorder %v406, 13
        %v1450 = vsel %vm1449, 1, 0
        %v1451 = vlaneseq
        %v1452 = vshrl.u32 %v1451, 7
        %v1453 = vsub.s32 0, %v1452
        %v1454 = vrot.slane %v1450, %v1453
        %v1455 = vlaneseq
        %v1456 = vshrl.u32 %v1455, 7
        %v1457 = vsub.s32 1, %v1456
        %v1458 = vrot.slane %v1450, %v1457
        %vm1459 = vcmp.eq.s32.totalorder %v1454, 1
        %vm1460 = vcmp.eq.s32.totalorder %v1458, 1
        %1469 = vrot.lane.b32.xlu0 %v1421, 124
        %v1470 = vpop.permute.xlu0 %1469
        %1471 = vrot.lane.b32.xlu0 %v1405, 124
        %v1472 = vpop.permute.xlu0 %1471
        %1473 = vrot.lane.b32.xlu0 %v1425, 124
        %v1474 = vpop.permute.xlu0 %1473
        %1475 = vrot.lane.b32.xlu0 %v1422, 124
        %v1476 = vpop.permute.xlu0 %1475
        %1477 = vrot.lane.b32.xlu0 %v1406, 124
        %v1478 = vpop.permute.xlu0 %1477
        %1479 = vrot.lane.b32.xlu0 %v1426, 124
        %v1480 = vpop.permute.xlu0 %1479
        %1481 = vrot.lane.b32.xlu0 %v1423, 124
        %v1482 = vpop.permute.xlu0 %1481
        %1483 = vrot.lane.b32.xlu0 %v1407, 124
        %v1484 = vpop.permute.xlu0 %1483
        %1485 = vrot.lane.b32.xlu0 %v1427, 124
        %v1486 = vpop.permute.xlu0 %1485
        %1487 = vrot.lane.b32.xlu0 %v1424, 124
        %v1488 = vpop.permute.xlu0 %1487
        %1489 = vrot.lane.b32.xlu0 %v1408, 124
        %v1490 = vpop.permute.xlu0 %1489
        %1491 = vrot.lane.b32.xlu0 %v1428, 124
        %v1492 = vpop.permute.xlu0 %1491
        %vm1493 = vcmask 1014784
        %v1494 = vsel %vm1493, %v1470, %v1472
        %v1495 = vsel %vm1493, %v1472, %v1474
        %v1496 = vsel %vm1493, %v1476, %v1478
        %v1497 = vsel %vm1493, %v1478, %v1480
        %v1498 = vsel %vm1493, %v1482, %v1484
        %v1499 = vsel %vm1493, %v1484, %v1486
        %v1500 = vsel %vm1493, %v1488, %v1490
        %v1501 = vsel %vm1493, %v1490, %v1492
        %v1510 = vsel %vm1459, %v1494, 0.0
        %v1511 = vsel %vm1460, %v1495, 0.0
        %v1512 = vsel %vm1459, %v1496, 0.0
        %v1513 = vsel %vm1460, %v1497, 0.0
        %v1514 = vsel %vm1459, %v1498, 0.0
        %v1515 = vsel %vm1460, %v1499, 0.0
        %v1516 = vsel %vm1459, %v1500, 0.0
        %v1517 = vsel %vm1460, %v1501, 0.0
        %1518 = vrot.lane.b32.xlu0 %v1421, 96
        %v1519 = vpop.permute.xlu0 %1518
        %1520 = vrot.lane.b32.xlu0 %v1405, 96
        %v1521 = vpop.permute.xlu0 %1520
        %1522 = vrot.lane.b32.xlu0 %v1425, 96
        %v1523 = vpop.permute.xlu0 %1522
        %1524 = vrot.lane.b32.xlu0 %v1422, 96
        %v1525 = vpop.permute.xlu0 %1524
        %1526 = vrot.lane.b32.xlu0 %v1406, 96
        %v1527 = vpop.permute.xlu0 %1526
        %1528 = vrot.lane.b32.xlu0 %v1426, 96
        %v1529 = vpop.permute.xlu0 %1528
        %1530 = vrot.lane.b32.xlu0 %v1423, 96
        %v1531 = vpop.permute.xlu0 %1530
        %1532 = vrot.lane.b32.xlu0 %v1407, 96
        %v1533 = vpop.permute.xlu0 %1532
        %1534 = vrot.lane.b32.xlu0 %v1427, 96
        %v1535 = vpop.permute.xlu0 %1534
        %1536 = vrot.lane.b32.xlu0 %v1424, 96
        %v1537 = vpop.permute.xlu0 %1536
        %1538 = vrot.lane.b32.xlu0 %v1408, 96
        %v1539 = vpop.permute.xlu0 %1538
        %1540 = vrot.lane.b32.xlu0 %v1428, 96
        %v1541 = vpop.permute.xlu0 %1540
        %v1542 = vsel %vm649, %v1519, %v1521
        %v1543 = vsel %vm649, %v1521, %v1523
        %v1544 = vsel %vm649, %v1525, %v1527
        %v1545 = vsel %vm649, %v1527, %v1529
        %v1546 = vsel %vm649, %v1531, %v1533
        %v1547 = vsel %vm649, %v1533, %v1535
        %v1548 = vsel %vm649, %v1537, %v1539
        %v1549 = vsel %vm649, %v1539, %v1541
        %v1558 = vsel %vm1439, %v1542, 0.0
        %v1559 = vsel %vm1440, %v1543, 0.0
        %v1560 = vsel %vm1439, %v1544, 0.0
        %v1561 = vsel %vm1440, %v1545, 0.0
        %v1562 = vsel %vm1439, %v1546, 0.0
        %v1563 = vsel %vm1440, %v1547, 0.0
        %v1564 = vsel %vm1439, %v1548, 0.0
        %v1565 = vsel %vm1440, %v1549, 0.0
        %1566 = vrot.lane.b32.xlu0 %v1421, 92
        %v1567 = vpop.permute.xlu0 %1566
        %1568 = vrot.lane.b32.xlu0 %v1405, 92
        %v1569 = vpop.permute.xlu0 %1568
        %1570 = vrot.lane.b32.xlu0 %v1425, 92
        %v1571 = vpop.permute.xlu0 %1570
        %1572 = vrot.lane.b32.xlu0 %v1422, 92
        %v1573 = vpop.permute.xlu0 %1572
        %1574 = vrot.lane.b32.xlu0 %v1406, 92
        %v1575 = vpop.permute.xlu0 %1574
        %1576 = vrot.lane.b32.xlu0 %v1426, 92
        %v1577 = vpop.permute.xlu0 %1576
        %1578 = vrot.lane.b32.xlu0 %v1423, 92
        %v1579 = vpop.permute.xlu0 %1578
        %1580 = vrot.lane.b32.xlu0 %v1407, 92
        %v1581 = vpop.permute.xlu0 %1580
        %1582 = vrot.lane.b32.xlu0 %v1427, 92
        %v1583 = vpop.permute.xlu0 %1582
        %1584 = vrot.lane.b32.xlu0 %v1424, 92
        %v1585 = vpop.permute.xlu0 %1584
        %1586 = vrot.lane.b32.xlu0 %v1408, 92
        %v1587 = vpop.permute.xlu0 %1586
        %1588 = vrot.lane.b32.xlu0 %v1428, 92
        %v1589 = vpop.permute.xlu0 %1588
        %vm1590 = vcmask 752640
        %v1591 = vsel %vm1590, %v1567, %v1569
        %v1592 = vsel %vm1590, %v1569, %v1571
        %v1593 = vsel %vm1590, %v1573, %v1575
        %v1594 = vsel %vm1590, %v1575, %v1577
        %v1595 = vsel %vm1590, %v1579, %v1581
        %v1596 = vsel %vm1590, %v1581, %v1583
        %v1597 = vsel %vm1590, %v1585, %v1587
        %v1598 = vsel %vm1590, %v1587, %v1589
        %v1607 = vsel %vm1459, %v1591, 0.0
        %v1608 = vsel %vm1460, %v1592, 0.0
        %v1609 = vsel %vm1459, %v1593, 0.0
        %v1610 = vsel %vm1460, %v1594, 0.0
        %v1611 = vsel %vm1459, %v1595, 0.0
        %v1612 = vsel %vm1460, %v1596, 0.0
        %v1613 = vsel %vm1459, %v1597, 0.0
        %v1614 = vsel %vm1460, %v1598, 0.0
        %1615 = vrot.lane.b32.xlu0 %v1421, 64
        %v1616 = vpop.permute.xlu0 %1615
        %1617 = vrot.lane.b32.xlu0 %v1405, 64
        %v1618 = vpop.permute.xlu0 %1617
        %1619 = vrot.lane.b32.xlu0 %v1425, 64
        %v1620 = vpop.permute.xlu0 %1619
        %1621 = vrot.lane.b32.xlu0 %v1422, 64
        %v1622 = vpop.permute.xlu0 %1621
        %1623 = vrot.lane.b32.xlu0 %v1406, 64
        %v1624 = vpop.permute.xlu0 %1623
        %1625 = vrot.lane.b32.xlu0 %v1426, 64
        %v1626 = vpop.permute.xlu0 %1625
        %1627 = vrot.lane.b32.xlu0 %v1423, 64
        %v1628 = vpop.permute.xlu0 %1627
        %1629 = vrot.lane.b32.xlu0 %v1407, 64
        %v1630 = vpop.permute.xlu0 %1629
        %1631 = vrot.lane.b32.xlu0 %v1427, 64
        %v1632 = vpop.permute.xlu0 %1631
        %1633 = vrot.lane.b32.xlu0 %v1424, 64
        %v1634 = vpop.permute.xlu0 %1633
        %1635 = vrot.lane.b32.xlu0 %v1408, 64
        %v1636 = vpop.permute.xlu0 %1635
        %1637 = vrot.lane.b32.xlu0 %v1428, 64
        %v1638 = vpop.permute.xlu0 %1637
        %vm1639 = vcmask 523264
        %v1640 = vsel %vm1639, %v1616, %v1618
        %v1641 = vsel %vm1639, %v1618, %v1620
        %v1642 = vsel %vm1639, %v1622, %v1624
        %v1643 = vsel %vm1639, %v1624, %v1626
        %v1644 = vsel %vm1639, %v1628, %v1630
        %v1645 = vsel %vm1639, %v1630, %v1632
        %v1646 = vsel %vm1639, %v1634, %v1636
        %v1647 = vsel %vm1639, %v1636, %v1638
        %v1656 = vsel %vm1439, %v1640, 0.0
        %v1657 = vsel %vm1440, %v1641, 0.0
        %v1658 = vsel %vm1439, %v1642, 0.0
        %v1659 = vsel %vm1440, %v1643, 0.0
        %v1660 = vsel %vm1439, %v1644, 0.0
        %v1661 = vsel %vm1440, %v1645, 0.0
        %v1662 = vsel %vm1439, %v1646, 0.0
        %v1663 = vsel %vm1440, %v1647, 0.0
        %1664 = vrot.lane.b32.xlu0 %v1421, 60
        %v1665 = vpop.permute.xlu0 %1664
        %1666 = vrot.lane.b32.xlu0 %v1405, 60
        %v1667 = vpop.permute.xlu0 %1666
        %1668 = vrot.lane.b32.xlu0 %v1425, 60
        %v1669 = vpop.permute.xlu0 %1668
        %1670 = vrot.lane.b32.xlu0 %v1422, 60
        %v1671 = vpop.permute.xlu0 %1670
        %1672 = vrot.lane.b32.xlu0 %v1406, 60
        %v1673 = vpop.permute.xlu0 %1672
        %1674 = vrot.lane.b32.xlu0 %v1426, 60
        %v1675 = vpop.permute.xlu0 %1674
        %1676 = vrot.lane.b32.xlu0 %v1423, 60
        %v1677 = vpop.permute.xlu0 %1676
        %1678 = vrot.lane.b32.xlu0 %v1407, 60
        %v1679 = vpop.permute.xlu0 %1678
        %1680 = vrot.lane.b32.xlu0 %v1427, 60
        %v1681 = vpop.permute.xlu0 %1680
        %1682 = vrot.lane.b32.xlu0 %v1424, 60
        %v1683 = vpop.permute.xlu0 %1682
        %1684 = vrot.lane.b32.xlu0 %v1408, 60
        %v1685 = vpop.permute.xlu0 %1684
        %1686 = vrot.lane.b32.xlu0 %v1428, 60
        %v1687 = vpop.permute.xlu0 %1686
        %vm1688 = vcmask 490496
        %v1689 = vsel %vm1688, %v1665, %v1667
        %v1690 = vsel %vm1688, %v1667, %v1669
        %v1691 = vsel %vm1688, %v1671, %v1673
        %v1692 = vsel %vm1688, %v1673, %v1675
        %v1693 = vsel %vm1688, %v1677, %v1679
        %v1694 = vsel %vm1688, %v1679, %v1681
        %v1695 = vsel %vm1688, %v1683, %v1685
        %v1696 = vsel %vm1688, %v1685, %v1687
        %v1705 = vsel %vm1459, %v1689, 0.0
        %v1706 = vsel %vm1460, %v1690, 0.0
        %v1707 = vsel %vm1459, %v1691, 0.0
        %v1708 = vsel %vm1460, %v1692, 0.0
        %v1709 = vsel %vm1459, %v1693, 0.0
        %v1710 = vsel %vm1460, %v1694, 0.0
        %v1711 = vsel %vm1459, %v1695, 0.0
        %v1712 = vsel %vm1460, %v1696, 0.0
        %1713 = vrot.lane.b32.xlu0 %v1421, 126
        %v1714 = vpop.permute.xlu0 %1713
        %1715 = vrot.lane.b32.xlu0 %v1405, 126
        %v1716 = vpop.permute.xlu0 %1715
        %1717 = vrot.lane.b32.xlu0 %v1425, 126
        %v1718 = vpop.permute.xlu0 %1717
        %1719 = vrot.lane.b32.xlu0 %v1422, 126
        %v1720 = vpop.permute.xlu0 %1719
        %1721 = vrot.lane.b32.xlu0 %v1406, 126
        %v1722 = vpop.permute.xlu0 %1721
        %1723 = vrot.lane.b32.xlu0 %v1426, 126
        %v1724 = vpop.permute.xlu0 %1723
        %1725 = vrot.lane.b32.xlu0 %v1423, 126
        %v1726 = vpop.permute.xlu0 %1725
        %1727 = vrot.lane.b32.xlu0 %v1407, 126
        %v1728 = vpop.permute.xlu0 %1727
        %1729 = vrot.lane.b32.xlu0 %v1427, 126
        %v1730 = vpop.permute.xlu0 %1729
        %1731 = vrot.lane.b32.xlu0 %v1424, 126
        %v1732 = vpop.permute.xlu0 %1731
        %1733 = vrot.lane.b32.xlu0 %v1408, 126
        %v1734 = vpop.permute.xlu0 %1733
        %1735 = vrot.lane.b32.xlu0 %v1428, 126
        %v1736 = vpop.permute.xlu0 %1735
        %v1737 = vsel %vm1275, %v1714, %v1716
        %v1738 = vsel %vm1275, %v1716, %v1718
        %v1739 = vsel %vm1275, %v1720, %v1722
        %v1740 = vsel %vm1275, %v1722, %v1724
        %v1741 = vsel %vm1275, %v1726, %v1728
        %v1742 = vsel %vm1275, %v1728, %v1730
        %v1743 = vsel %vm1275, %v1732, %v1734
        %v1744 = vsel %vm1275, %v1734, %v1736
        %1753 = vrot.lane.b32.xlu0 %v1421, 94
        %v1754 = vpop.permute.xlu0 %1753
        %1755 = vrot.lane.b32.xlu0 %v1405, 94
        %v1756 = vpop.permute.xlu0 %1755
        %1757 = vrot.lane.b32.xlu0 %v1425, 94
        %v1758 = vpop.permute.xlu0 %1757
        %1759 = vrot.lane.b32.xlu0 %v1422, 94
        %v1760 = vpop.permute.xlu0 %1759
        %1761 = vrot.lane.b32.xlu0 %v1406, 94
        %v1762 = vpop.permute.xlu0 %1761
        %1763 = vrot.lane.b32.xlu0 %v1426, 94
        %v1764 = vpop.permute.xlu0 %1763
        %1765 = vrot.lane.b32.xlu0 %v1423, 94
        %v1766 = vpop.permute.xlu0 %1765
        %1767 = vrot.lane.b32.xlu0 %v1407, 94
        %v1768 = vpop.permute.xlu0 %1767
        %1769 = vrot.lane.b32.xlu0 %v1427, 94
        %v1770 = vpop.permute.xlu0 %1769
        %1771 = vrot.lane.b32.xlu0 %v1424, 94
        %v1772 = vpop.permute.xlu0 %1771
        %1773 = vrot.lane.b32.xlu0 %v1408, 94
        %v1774 = vpop.permute.xlu0 %1773
        %1775 = vrot.lane.b32.xlu0 %v1428, 94
        %v1776 = vpop.permute.xlu0 %1775
        %vm1777 = vcmask 769024
        %v1778 = vsel %vm1777, %v1754, %v1756
        %v1779 = vsel %vm1777, %v1756, %v1758
        %v1780 = vsel %vm1777, %v1760, %v1762
        %v1781 = vsel %vm1777, %v1762, %v1764
        %v1782 = vsel %vm1777, %v1766, %v1768
        %v1783 = vsel %vm1777, %v1768, %v1770
        %v1784 = vsel %vm1777, %v1772, %v1774
        %v1785 = vsel %vm1777, %v1774, %v1776
        %1794 = vrot.lane.b32.xlu0 %v1421, 62
        %v1795 = vpop.permute.xlu0 %1794
        %1796 = vrot.lane.b32.xlu0 %v1405, 62
        %v1797 = vpop.permute.xlu0 %1796
        %1798 = vrot.lane.b32.xlu0 %v1425, 62
        %v1799 = vpop.permute.xlu0 %1798
        %1800 = vrot.lane.b32.xlu0 %v1422, 62
        %v1801 = vpop.permute.xlu0 %1800
        %1802 = vrot.lane.b32.xlu0 %v1406, 62
        %v1803 = vpop.permute.xlu0 %1802
        %1804 = vrot.lane.b32.xlu0 %v1426, 62
        %v1805 = vpop.permute.xlu0 %1804
        %1806 = vrot.lane.b32.xlu0 %v1423, 62
        %v1807 = vpop.permute.xlu0 %1806
        %1808 = vrot.lane.b32.xlu0 %v1407, 62
        %v1809 = vpop.permute.xlu0 %1808
        %1810 = vrot.lane.b32.xlu0 %v1427, 62
        %v1811 = vpop.permute.xlu0 %1810
        %1812 = vrot.lane.b32.xlu0 %v1424, 62
        %v1813 = vpop.permute.xlu0 %1812
        %1814 = vrot.lane.b32.xlu0 %v1408, 62
        %v1815 = vpop.permute.xlu0 %1814
        %1816 = vrot.lane.b32.xlu0 %v1428, 62
        %v1817 = vpop.permute.xlu0 %1816
        %vm1818 = vcmask 506880
        %v1819 = vsel %vm1818, %v1795, %v1797
        %v1820 = vsel %vm1818, %v1797, %v1799
        %v1821 = vsel %vm1818, %v1801, %v1803
        %v1822 = vsel %vm1818, %v1803, %v1805
        %v1823 = vsel %vm1818, %v1807, %v1809
        %v1824 = vsel %vm1818, %v1809, %v1811
        %v1825 = vsel %vm1818, %v1813, %v1815
        %v1826 = vsel %vm1818, %v1815, %v1817
        %v1835 = vld [vmem:[%s5] sm:$0xff]
        %v1836 = vld [vmem:[%s5 + $0x8] sm:$0xff]
        %v1837 = vld [vmem:[%s5 + $0x10] sm:$0xff]
        %v1838 = vld [vmem:[%s5 + $0x18] sm:$0xff]
        %v1839 = vld [vmem:[%s5 + $0x20] sm:$0xff]
        %v1840 = vld [vmem:[%s5 + $0x28] sm:$0xff]
        %v1841 = vld [vmem:[%s5 + $0x30] sm:$0xff]
        %v1842 = vld [vmem:[%s5 + $0x38] sm:$0xff]
        %v1843 = vld [vmem:[%s5 + $0x40] sm:$0xff]
        %v1844 = vld [vmem:[%s5 + $0x48] sm:$0xff]
        %v1845 = vld [vmem:[%s5 + $0x50] sm:$0xff]
        %v1846 = vld [vmem:[%s5 + $0x58] sm:$0xff]
        %vm1847 = vcmask 261120
        %v1849 = vsel %vm1847, %v1837, 0
        %v1852 = vsel %vm1847, %v1840, 0
        %v1855 = vsel %vm1847, %v1843, 0
        %v1858 = vsel %vm1847, %v1846, 0
        %1860 = vmatprep.subr.mxu0 %v1442
        %1861 = vmatpush1.msra.mxu0 %v1441
        %1862 = vmatprep.subr.mxu0 %v1444
        %1863 = vmatpush1.msra.mxu0 %v1443
        %1864 = vmatprep.subr.mxu0 %v1446
        %1865 = vmatpush1.msra.mxu0 %v1445
        %1866 = vmatprep.subr.mxu0 %v1448
        %1867 = vmatpush1.msra.mxu0 %v1447
        %1868 = vmatprep.subr.mxu0 %v1738
        %1869 = vmatpush1.msra.mxu0 %v1737
        %1870 = vmatprep.subr.mxu0 %v1740
        %1871 = vmatpush1.msra.mxu0 %v1739
        %1872 = vmatprep.subr.mxu0 %v1742
        %1873 = vmatpush1.msra.mxu0 %v1741
        %1874 = vmatprep.subr.mxu0 %v1744
        %1875 = vmatpush1.msra.mxu0 %v1743
        %1876 = vmatprep.subr.mxu0 %v1511
        %1877 = vmatpush1.msra.mxu0 %v1510
        %1878 = vmatprep.subr.mxu0 %v1513
        %1879 = vmatpush1.msra.mxu0 %v1512
        %1880 = vmatprep.subr.mxu0 %v1515
        %1881 = vmatpush1.msra.mxu0 %v1514
        %1882 = vmatprep.subr.mxu0 %v1517
        %1883 = vmatpush1.msra.mxu0 %v1516
        %1884 = vmatprep.subr.mxu0 %v1559
        %1885 = vmatpush1.msra.mxu0 %v1558
        %1886 = vmatprep.subr.mxu0 %v1561
        %1887 = vmatpush1.msra.mxu0 %v1560
        %1888 = vmatprep.subr.mxu0 %v1563
        %1889 = vmatpush1.msra.mxu0 %v1562
        %1890 = vmatprep.subr.mxu0 %v1565
        %1891 = vmatpush1.msra.mxu0 %v1564
        %1892 = vmatprep.subr.mxu0 %v1779
        %1893 = vmatpush1.msra.mxu0 %v1778
        %1894 = vmatprep.subr.mxu0 %v1781
        %1895 = vmatpush1.msra.mxu0 %v1780
        %1896 = vmatprep.subr.mxu0 %v1783
        %1897 = vmatpush1.msra.mxu0 %v1782
        %1898 = vmatprep.subr.mxu0 %v1785
        %1899 = vmatpush1.msra.mxu0 %v1784
        %1900 = vmatprep.subr.mxu0 %v1608
        %1901 = vmatpush1.msra.mxu0 %v1607
        %1902 = vmatprep.subr.mxu0 %v1610
        %1903 = vmatpush1.msra.mxu0 %v1609
        %1904 = vmatprep.subr.mxu0 %v1612
        %1905 = vmatpush1.msra.mxu0 %v1611
        %1906 = vmatprep.subr.mxu0 %v1614
        %1907 = vmatpush1.msra.mxu0 %v1613
        %1908 = vmatprep.subr.mxu0 %v1657
        %1909 = vmatpush1.msra.mxu0 %v1656
        %1910 = vmatprep.subr.mxu0 %v1659
        %1911 = vmatpush1.msra.mxu0 %v1658
        %1912 = vmatprep.subr.mxu0 %v1661
        %1913 = vmatpush1.msra.mxu0 %v1660
        %1914 = vmatprep.subr.mxu0 %v1663
        %1915 = vmatpush1.msra.mxu0 %v1662
        %1916 = vmatprep.subr.mxu0 %v1820
        %1917 = vmatpush1.msra.mxu0 %v1819
        %1918 = vmatprep.subr.mxu0 %v1822
        %1919 = vmatpush1.msra.mxu0 %v1821
        %1920 = vmatprep.subr.mxu0 %v1824
        %1921 = vmatpush1.msra.mxu0 %v1823
        %1922 = vmatprep.subr.mxu0 %v1826
        %1923 = vmatpush1.msra.mxu0 %v1825
        %1924 = vmatprep.mubr.f32.mxu0 %v1836
        %1925 = vmatmul.mubr.f32.gmra.mrb[0].mxu0 %v1835
        %v1926 = vpop.f32.mrb[0].mxu0
        %v1927 = vadd.f32 0.0, %v1926
        %v1928 = vpop.f32.mrb[0].mxu0
        %v1929 = vadd.f32 0.0, %v1928
        %1930 = vmatprep.mubr.f32.mxu0 %v1839
        %1931 = vmatmul.mubr.f32.gmra.mrb[0].mxu0 %v1838
        %v1932 = vpop.f32.mrb[0].mxu0
        %v1933 = vadd.f32 0.0, %v1932
        %v1934 = vpop.f32.mrb[0].mxu0
        %v1935 = vadd.f32 0.0, %v1934
        %1936 = vmatprep.mubr.f32.mxu0 %v1842
        %1937 = vmatmul.mubr.f32.gmra.mrb[0].mxu0 %v1841
        %v1938 = vpop.f32.mrb[0].mxu0
        %v1939 = vadd.f32 0.0, %v1938
        %v1940 = vpop.f32.mrb[0].mxu0
        %v1941 = vadd.f32 0.0, %v1940
        %1942 = vmatprep.mubr.f32.mxu0 %v1845
        %1943 = vmatmul.mubr.f32.gmra.mrb[0].mxu0 %v1844
        %v1944 = vpop.f32.mrb[0].mxu0
        %v1945 = vadd.f32 0.0, %v1944
        %v1946 = vpop.f32.mrb[0].mxu0
        %v1947 = vadd.f32 0.0, %v1946
        %1948 = vdwg.mxu0
        %1949 = vmatprep.subr.mxu0 %v1706
        %1950 = vmatpush1.msra.mxu0 %v1705
        %1951 = vmatprep.subr.mxu0 %v1708
        %1952 = vmatpush1.msra.mxu0 %v1707
        %1953 = vmatprep.subr.mxu0 %v1710
        %1954 = vmatpush1.msra.mxu0 %v1709
        %1955 = vmatprep.subr.mxu0 %v1712
        %1956 = vmatpush1.msra.mxu0 %v1711
        %1957 = vmatprep.subr.mxu0 0.0
        %1958 = vmatpush1.msra.mxu0 0.0
        %1959 = vmatprep.subr.mxu0 0.0
        %1960 = vmatpush1.msra.mxu0 0.0
        %1961 = vmatprep.subr.mxu0 0.0
        %1962 = vmatpush1.msra.mxu0 0.0
        %1963 = vmatprep.subr.mxu0 0.0
        %1964 = vmatpush1.msra.mxu0 0.0
        %1965 = vmatprep.subr.mxu0 0.0
        %1966 = vmatpush1.msra.mxu0 0.0
        %1967 = vmatprep.subr.mxu0 0.0
        %1968 = vmatpush1.msra.mxu0 0.0
        %1969 = vmatprep.subr.mxu0 0.0
        %1970 = vmatpush1.msra.mxu0 0.0
        %1971 = vmatprep.subr.mxu0 0.0
        %1972 = vmatpush1.msra.mxu0 0.0
        %1973 = vmatprep.subr.mxu0 0.0
        %1974 = vmatpush1.msra.mxu0 0.0
        %1975 = vmatprep.subr.mxu0 0.0
        %1976 = vmatpush1.msra.mxu0 0.0
        %1977 = vmatprep.subr.mxu0 0.0
        %1978 = vmatpush1.msra.mxu0 0.0
        %1979 = vmatprep.subr.mxu0 0.0
        %1980 = vmatpush1.msra.mxu0 0.0
        %1981 = vmatprep.subr.mxu0 0.0
        %1982 = vmatpush1.msra.mxu0 0.0
        %1983 = vmatprep.subr.mxu0 0.0
        %1984 = vmatpush1.msra.mxu0 0.0
        %1985 = vmatprep.subr.mxu0 0.0
        %1986 = vmatpush1.msra.mxu0 0.0
        %1987 = vmatprep.subr.mxu0 0.0
        %1988 = vmatpush1.msra.mxu0 0.0
        %1989 = vmatprep.subr.mxu0 0.0
        %1990 = vmatpush1.msra.mxu0 0.0
        %1991 = vmatprep.subr.mxu0 0.0
        %1992 = vmatpush1.msra.mxu0 0.0
        %1993 = vmatprep.subr.mxu0 0.0
        %1994 = vmatpush1.msra.mxu0 0.0
        %1995 = vmatprep.subr.mxu0 0.0
        %1996 = vmatpush1.msra.mxu0 0.0
        %1997 = vmatprep.subr.mxu0 0.0
        %1998 = vmatpush1.msra.mxu0 0.0
        %1999 = vmatprep.subr.mxu0 0.0
        %2000 = vmatpush1.msra.mxu0 0.0
        %2001 = vmatprep.subr.mxu0 0.0
        %2002 = vmatpush1.msra.mxu0 0.0
        %2003 = vmatprep.subr.mxu0 0.0
        %2004 = vmatpush1.msra.mxu0 0.0
        %2005 = vmatprep.subr.mxu0 0.0
        %2006 = vmatpush1.msra.mxu0 0.0
        %2007 = vmatprep.subr.mxu0 0.0
        %2008 = vmatpush1.msra.mxu0 0.0
        %2009 = vmatprep.subr.mxu0 0.0
        %2010 = vmatpush1.msra.mxu0 0.0
        %2011 = vmatprep.subr.mxu0 0.0
        %2012 = vmatpush1.msra.mxu0 0.0
        %2013 = vmatprep.mubr.f32.mxu0 0.0
        %2014 = vmatmul.mubr.f32.gmra.mrb[0].mxu0 %v1849
        %v2015 = vpop.f32.mrb[0].mxu0
        %v2016 = vadd.f32 %v1927, %v2015
        %v2017 = vpop.f32.mrb[0].mxu0
        %v2018 = vadd.f32 %v1929, %v2017
        %2019 = vmatprep.mubr.f32.mxu0 0.0
        %2020 = vmatmul.mubr.f32.gmra.mrb[0].mxu0 %v1852
        %v2021 = vpop.f32.mrb[0].mxu0
        %v2022 = vadd.f32 %v1933, %v2021
        %v2023 = vpop.f32.mrb[0].mxu0
        %v2024 = vadd.f32 %v1935, %v2023
        %2025 = vmatprep.mubr.f32.mxu0 0.0
        %2026 = vmatmul.mubr.f32.gmra.mrb[0].mxu0 %v1855
        %v2027 = vpop.f32.mrb[0].mxu0
        %v2028 = vadd.f32 %v1939, %v2027
        %v2029 = vpop.f32.mrb[0].mxu0
        %v2030 = vadd.f32 %v1941, %v2029
        %2031 = vmatprep.mubr.f32.mxu0 0.0
        %2032 = vmatmul.mubr.f32.gmra.mrb[0].mxu0 %v1858
        %v2033 = vpop.f32.mrb[0].mxu0
        %v2034 = vadd.f32 %v1945, %v2033
        %v2035 = vpop.f32.mrb[0].mxu0
        %v2036 = vadd.f32 %v1947, %v2035
        %2037 = vdwg.mxu0
        %v2038 = vld [vmem:[%s6] sm:$0xff]
        %v2039 = vld [vmem:[%s6 + $0x8] sm:$0xff]
        %v2040 = vld [vmem:[%s6 + $0x10] sm:$0xff]
        %v2041 = vld [vmem:[%s6 + $0x18] sm:$0xff]
        %2043 = vset.pattern.permute.xlu0 0
        %2044 = vperm.xlu0 %2043, %v2038
        %v2045 = vpop.permute.xlu0 %2044
        %2048 = vset.pattern.permute.xlu0 0
        %2049 = vperm.xlu0 %2048, %v2039
        %v2050 = vpop.permute.xlu0 %2049
        %2053 = vset.pattern.permute.xlu0 0
        %2054 = vperm.xlu0 %2053, %v2040
        %v2055 = vpop.permute.xlu0 %2054
        %2058 = vset.pattern.permute.xlu0 0
        %2059 = vperm.xlu0 %2058, %v2041
        %v2060 = vpop.permute.xlu0 %2059
        %v2062 = vmul.f32 %v2016, %v2045
        %v2063 = vmul.f32 %v2018, %v2045
        %v2064 = vmul.f32 %v2022, %v2050
        %v2065 = vmul.f32 %v2024, %v2050
        %v2066 = vmul.f32 %v2028, %v2055
        %v2067 = vmul.f32 %v2030, %v2055
        %v2068 = vmul.f32 %v2034, %v2060
        %v2069 = vmul.f32 %v2036, %v2060
        %v2070 = vld [vmem:[%s7] sm:$0xff]
        %v2071 = vld [vmem:[%s7 + $0x8] sm:$0xff]
        %v2072 = vld [vmem:[%s7 + $0x10] sm:$0xff]
        %v2073 = vld [vmem:[%s7 + $0x18] sm:$0xff]
        %2075 = vset.pattern.permute.xlu0 0
        %2076 = vperm.xlu0 %2075, %v2070
        %v2077 = vpop.permute.xlu0 %2076
        %2080 = vset.pattern.permute.xlu0 0
        %2081 = vperm.xlu0 %2080, %v2071
        %v2082 = vpop.permute.xlu0 %2081
        %2085 = vset.pattern.permute.xlu0 0
        %2086 = vperm.xlu0 %2085, %v2072
        %v2087 = vpop.permute.xlu0 %2086
        %2090 = vset.pattern.permute.xlu0 0
        %2091 = vperm.xlu0 %2090, %v2073
        %v2092 = vpop.permute.xlu0 %2091
        %v2094 = vadd.f32 %v2062, %v2077
        %v2095 = vadd.f32 %v2063, %v2077
        %v2096 = vadd.f32 %v2064, %v2082
        %v2097 = vadd.f32 %v2065, %v2082
        %v2098 = vadd.f32 %v2066, %v2087
        %v2099 = vadd.f32 %v2067, %v2087
        %v2100 = vadd.f32 %v2068, %v2092
        %v2101 = vadd.f32 %v2069, %v2092
        %v2102 = vmax.f32 %v2094, 0.0
        %v2103 = vmax.f32 %v2095, 0.0
        %v2104 = vmax.f32 %v2096, 0.0
        %v2105 = vmax.f32 %v2097, 0.0
        %v2106 = vmax.f32 %v2098, 0.0
        %v2107 = vmax.f32 %v2099, 0.0
        %v2108 = vmax.f32 %v2100, 0.0
        %v2109 = vmax.f32 %v2101, 0.0
        %v2110 = vld [vmem:[%s8] sm:$0xff]
        %v2111 = vld [vmem:[%s8 + $0x8] sm:$0xff]
        %v2112 = vld [vmem:[%s8 + $0x10] sm:$0xff]
        %v2113 = vld [vmem:[%s8 + $0x18] sm:$0xff]
        %v2115 = vsel %vm1847, %v2110, 0
        %v2118 = vsel %vm1847, %v2111, 0
        %v2121 = vsel %vm1847, %v2112, 0
        %v2124 = vsel %vm1847, %v2113, 0
        %2126 = vmatprep.subr.mxu0 %v2103
        %2127 = vmatpush1.msra.mxu0 %v2102
        %2128 = vmatprep.subr.mxu0 %v2105
        %2129 = vmatpush1.msra.mxu0 %v2104
        %2130 = vmatprep.subr.mxu0 %v2107
        %2131 = vmatpush1.msra.mxu0 %v2106
        %2132 = vmatprep.subr.mxu0 %v2109
        %2133 = vmatpush1.msra.mxu0 %v2108
        %2134 = vmatprep.subr.mxu0 0.0
        %2135 = vmatpush1.msra.mxu0 0.0
        %2136 = vmatprep.subr.mxu0 0.0
        %2137 = vmatpush1.msra.mxu0 0.0
        %2138 = vmatprep.subr.mxu0 0.0
        %2139 = vmatpush1.msra.mxu0 0.0
        %2140 = vmatprep.subr.mxu0 0.0
        %2141 = vmatpush1.msra.mxu0 0.0
        %2142 = vmatprep.subr.mxu0 0.0
        %2143 = vmatpush1.msra.mxu0 0.0
        %2144 = vmatprep.subr.mxu0 0.0
        %2145 = vmatpush1.msra.mxu0 0.0
        %2146 = vmatprep.subr.mxu0 0.0
        %2147 = vmatpush1.msra.mxu0 0.0
        %2148 = vmatprep.subr.mxu0 0.0
        %2149 = vmatpush1.msra.mxu0 0.0
        %2150 = vmatprep.subr.mxu0 0.0
        %2151 = vmatpush1.msra.mxu0 0.0
        %2152 = vmatprep.subr.mxu0 0.0
        %2153 = vmatpush1.msra.mxu0 0.0
        %2154 = vmatprep.subr.mxu0 0.0
        %2155 = vmatpush1.msra.mxu0 0.0
        %2156 = vmatprep.subr.mxu0 0.0
        %2157 = vmatpush1.msra.mxu0 0.0
        %2158 = vmatprep.subr.mxu0 0.0
        %2159 = vmatpush1.msra.mxu0 0.0
        %2160 = vmatprep.subr.mxu0 0.0
        %2161 = vmatpush1.msra.mxu0 0.0
        %2162 = vmatprep.subr.mxu0 0.0
        %2163 = vmatpush1.msra.mxu0 0.0
        %2164 = vmatprep.subr.mxu0 0.0
        %2165 = vmatpush1.msra.mxu0 0.0
        %2166 = vmatprep.subr.mxu0 0.0
        %2167 = vmatpush1.msra.mxu0 0.0
        %2168 = vmatprep.subr.mxu0 0.0
        %2169 = vmatpush1.msra.mxu0 0.0
        %2170 = vmatprep.subr.mxu0 0.0
        %2171 = vmatpush1.msra.mxu0 0.0
        %2172 = vmatprep.subr.mxu0 0.0
        %2173 = vmatpush1.msra.mxu0 0.0
        %2174 = vmatprep.subr.mxu0 0.0
        %2175 = vmatpush1.msra.mxu0 0.0
        %2176 = vmatprep.subr.mxu0 0.0
        %2177 = vmatpush1.msra.mxu0 0.0
        %2178 = vmatprep.subr.mxu0 0.0
        %2179 = vmatpush1.msra.mxu0 0.0
        %2180 = vmatprep.subr.mxu0 0.0
        %2181 = vmatpush1.msra.mxu0 0.0
        %2182 = vmatprep.subr.mxu0 0.0
        %2183 = vmatpush1.msra.mxu0 0.0
        %2184 = vmatprep.subr.mxu0 0.0
        %2185 = vmatpush1.msra.mxu0 0.0
        %2186 = vmatprep.subr.mxu0 0.0
        %2187 = vmatpush1.msra.mxu0 0.0
        %2188 = vmatprep.subr.mxu0 0.0
        %2189 = vmatpush1.msra.mxu0 0.0
        %2190 = vmatprep.mubr.f32.mxu0 0.0
        %2191 = vmatmul.mubr.f32.gmra.mrb[0].mxu0 %v2115
        %v2192 = vpop.f32.mrb[0].mxu0
        %v2193 = vadd.f32 0.0, %v2192
        %v2194 = vpop.f32.mrb[0].mxu0
        %v2195 = vadd.f32 0.0, %v2194
        %2196 = vmatprep.mubr.f32.mxu0 0.0
        %2197 = vmatmul.mubr.f32.gmra.mrb[0].mxu0 %v2118
        %v2198 = vpop.f32.mrb[0].mxu0
        %v2199 = vadd.f32 0.0, %v2198
        %v2200 = vpop.f32.mrb[0].mxu0
        %v2201 = vadd.f32 0.0, %v2200
        %2202 = vmatprep.mubr.f32.mxu0 0.0
        %2203 = vmatmul.mubr.f32.gmra.mrb[0].mxu0 %v2121
        %v2204 = vpop.f32.mrb[0].mxu0
        %v2205 = vadd.f32 0.0, %v2204
        %v2206 = vpop.f32.mrb[0].mxu0
        %v2207 = vadd.f32 0.0, %v2206
        %2208 = vmatprep.mubr.f32.mxu0 0.0
        %2209 = vmatmul.mubr.f32.gmra.mrb[0].mxu0 %v2124
        %v2210 = vpop.f32.mrb[0].mxu0
        %v2211 = vadd.f32 0.0, %v2210
        %v2212 = vpop.f32.mrb[0].mxu0
        %v2213 = vadd.f32 0.0, %v2212
        %2214 = vdwg.mxu0
        %v2215 = vld [vmem:[%s9] sm:$0xff]
        %v2216 = vld [vmem:[%s9 + $0x8] sm:$0xff]
        %v2217 = vld [vmem:[%s9 + $0x10] sm:$0xff]
        %v2218 = vld [vmem:[%s9 + $0x18] sm:$0xff]
        %2220 = vset.pattern.permute.xlu0 0
        %2221 = vperm.xlu0 %2220, %v2215
        %v2222 = vpop.permute.xlu0 %2221
        %2225 = vset.pattern.permute.xlu0 0
        %2226 = vperm.xlu0 %2225, %v2216
        %v2227 = vpop.permute.xlu0 %2226
        %2230 = vset.pattern.permute.xlu0 0
        %2231 = vperm.xlu0 %2230, %v2217
        %v2232 = vpop.permute.xlu0 %2231
        %2235 = vset.pattern.permute.xlu0 0
        %2236 = vperm.xlu0 %2235, %v2218
        %v2237 = vpop.permute.xlu0 %2236
        %v2239 = vmul.f32 %v2193, %v2222
        %v2240 = vmul.f32 %v2195, %v2222
        %v2241 = vmul.f32 %v2199, %v2227
        %v2242 = vmul.f32 %v2201, %v2227
        %v2243 = vmul.f32 %v2205, %v2232
        %v2244 = vmul.f32 %v2207, %v2232
        %v2245 = vmul.f32 %v2211, %v2237
        %v2246 = vmul.f32 %v2213, %v2237
        %v2247 = vld [vmem:[%s10] sm:$0xff]
        %v2248 = vld [vmem:[%s10 + $0x8] sm:$0xff]
        %v2249 = vld [vmem:[%s10 + $0x10] sm:$0xff]
        %v2250 = vld [vmem:[%s10 + $0x18] sm:$0xff]
        %2252 = vset.pattern.permute.xlu0 0
        %2253 = vperm.xlu0 %2252, %v2247
        %v2254 = vpop.permute.xlu0 %2253
        %2257 = vset.pattern.permute.xlu0 0
        %2258 = vperm.xlu0 %2257, %v2248
        %v2259 = vpop.permute.xlu0 %2258
        %2262 = vset.pattern.permute.xlu0 0
        %2263 = vperm.xlu0 %2262, %v2249
        %v2264 = vpop.permute.xlu0 %2263
        %2267 = vset.pattern.permute.xlu0 0
        %2268 = vperm.xlu0 %2267, %v2250
        %v2269 = vpop.permute.xlu0 %2268
        %v2271 = vadd.f32 %v2239, %v2254
        %v2272 = vadd.f32 %v2240, %v2254
        %v2273 = vadd.f32 %v2241, %v2259
        %v2274 = vadd.f32 %v2242, %v2259
        %v2275 = vadd.f32 %v2243, %v2264
        %v2276 = vadd.f32 %v2244, %v2264
        %v2277 = vadd.f32 %v2245, %v2269
        %v2278 = vadd.f32 %v2246, %v2269
        %2279 = vst [vmem:[%s392] sm:$0xff] %v2271
        %2280 = vst [vmem:[%s392 + $0x8] sm:$0xff] %v2272
        %2281 = vst [vmem:[%s392 + $0x10] sm:$0xff] %v2273
        %2282 = vst [vmem:[%s392 + $0x18] sm:$0xff] %v2274
        %2283 = vst [vmem:[%s392 + $0x20] sm:$0xff] %v2275
        %2284 = vst [vmem:[%s392 + $0x28] sm:$0xff] %v2276
        %2285 = vst [vmem:[%s392 + $0x30] sm:$0xff] %v2277
        %2286 = vst [vmem:[%s392 + $0x38] sm:$0xff] %v2278
        %s2287 = sand.u32 %s270, 1
        %s2288 = scalar_lea.sflag [#allocation4], %s2287
        %s2289 = sand.u32 %s270, 1
        %s2290 = smul.addr %s2289, 64
        %s2291 = scalar_lea.vmem [#allocation5], %s2290
        // Predicated region
        $region69: #{tpu_custom_call.1} parent=63 // pred_check
          %p2292 = pneg %p280
        $region70: #{tpu_custom_call.1} parent=63 // pred_check_branch
          %2294 = sbr.rel (%p2292) target = $region72
        $region71: #{tpu_custom_call.1} parent=63 // pred_region
          %s2296 = ssub.s32 1024, 1024
          %2297 = vsyncadd %s2288, %s2296
          %s2298 = smul.addr %s26, 8
          %s2299 = smul.addr %s2298, 128
          %s2300 = scalar_lea.hbm %s11, %s2299
          %s2301 = sshll.u32 %s2291, 4
          %s2302 = int_to_ptr.vmem [resolvable:$true] %s2301
          %2307 = dma.vmem_to_hbm [thread:$0]  %s2302, 1024, %s2300, %s2288, 256, 256, 16
        $region72: #{tpu_custom_call.1} parent=63 // pred_fallthru
          _
      $region64: #{tpu_custom_call.1} parent=5 // pred_fallthru
        _
      %p2308 = scmp.le.s32.totalorder 2, %s21
      // Predicated region
      $region73: #{tpu_custom_call.1} parent=5 // pred_check
        %p2309 = pneg %p2308
      $region74: #{tpu_custom_call.1} parent=5 // pred_check_branch
        %2311 = sbr.rel (%p2309) target = $region76
      $region75: #{tpu_custom_call.1} parent=5 // pred_region
        %s2312 = ssub.s32 %s21, 2
        // Predicated region
        $region77: #{tpu_custom_call.1} parent=75 // pred_check
          %p2313 = pneg %p286
        $region78: #{tpu_custom_call.1} parent=75 // pred_check_branch
          %2315 = sbr.rel (%p2313) target = $region80
        $region79: #{tpu_custom_call.1} parent=75 // pred_region
          %s2316 = sand.u32 %s271, 1
          %s2317 = scalar_lea.sflag [#allocation4], %s2316
          %s2318 = sand.u32 %s271, 1
          %s2319 = smul.addr %s2318, 64
          %s2320 = scalar_lea.vmem [#allocation5], %s2319
          %2321 = dma.done %s2317, 1024
        $region80: #{tpu_custom_call.1} parent=75 // pred_fallthru
          _
      $region76: #{tpu_custom_call.1} parent=5 // pred_fallthru
        _
    $region6: #{tpu_custom_call.1} parent=1 // loop_footer
      %s25 = sadd.s32 1, %s21
    $region7: #{tpu_custom_call.1} parent=1 // loop_footer_branch
      %20 = sbr.rel target = $region3
    $region8: #{tpu_custom_call.1} parent=1 // loop_exit
      _
    %2322 = vsyncpa [#allocation3], 1
    %s2323 = scalar_lea.sflag [#allocation3], 1
    %2324 = vsyncpa %s2323, 1
    %2325 = vsyncpa [#allocation4], 1
    %s2326 = scalar_lea.sflag [#allocation4], 1
    %2327 = vsyncpa %s2326, 1

</llo_original>
